<compile_context>
chip_gen: v6e
topology: v6e:2x2x1
jax: 0.10.0
libtpu: 0.0.40
codegen_flags: <defaults>
</compile_context>

<pallas_src>
import functools

import jax
import jax.numpy as jnp
from jax import lax
from jax.experimental import pallas as pl
from jax.experimental.pallas import tpu as pltpu


def simple_rnn_kernel(x_ref,                       # SMEM (T,)     scalar input sequence
                      weff0_ref, beff0_ref,        # VMEM (1,4H), (1,4H)  (input Linear folded in)
                      whh0_t_ref,                  # VMEM (H,4H)
                      wcat1_ref, b1_ref,           # VMEM (2H,4H), (1,4H)
                      wout_t_ref, bout_ref,        # VMEM (H,1), (1,1)
                      out_ref, hN_ref, cN_ref,     # VMEM (T,1), (2,H), (2,H)
                      h1_scratch):                 # VMEM scratch (T_pad, H)
    T = x_ref.shape[0]
    H = whh0_t_ref.shape[0]

    def gate_nonlin(gates):
        # Gate columns pre-permuted in the wrapper to (i, f, o | g):
        # one sigmoid over the first 3H columns, one tanh over the last H.
        sig = jax.nn.sigmoid(gates[:, 0:3 * H])
        g = jnp.tanh(gates[:, 3 * H:4 * H])
        return sig[:, 0:H], sig[:, H:2 * H], sig[:, 2 * H:3 * H], g   # i, f, o, g

    def body(t, carry):
        h0, c0, h1, c1 = carry
        x_t = x_ref[t]                                        # scalar

        # ---- layer 0 (input Linear folded into W_ih / bias) ----
        gates0 = (x_t * weff0_ref[...]
                  + jnp.dot(h0, whh0_t_ref[...], preferred_element_type=jnp.float32)
                  + beff0_ref[...])
        i0, f0, o0, g0 = gate_nonlin(gates0)
        c0 = f0 * c0 + i0 * g0
        h0 = o0 * jnp.tanh(c0)

        # ---- layer 1 (fused [h0, h1] @ W_cat, single MXU pass) ----
        xin1 = jnp.concatenate([h0, h1], axis=1)              # (1, 2H)
        gates1 = (jnp.dot(xin1, wcat1_ref[...], preferred_element_type=jnp.float32)
                  + b1_ref[...])
        i1, f1, o1, g1 = gate_nonlin(gates1)
        c1 = f1 * c1 + i1 * g1
        h1 = o1 * jnp.tanh(c1)

        # Stage h1; output projection is deferred to a single post-loop matmul.
        h1_scratch[pl.ds(t, 1), :] = h1
        return (h0, c0, h1, c1)

    zeros = jnp.zeros((1, H), dtype=jnp.float32)
    h0, c0, h1, c1 = lax.fori_loop(0, T, body, (zeros, zeros, zeros, zeros),
                                   unroll=True)

    # Deferred output projection: one (T,H)@(H,1) matmul + one bulk store.
    y = (jnp.dot(h1_scratch[0:T, :], wout_t_ref[...],
                 preferred_element_type=jnp.float32) + bout_ref[...])
    out_ref[...] = y

    hN_ref[0:1, :] = h0
    hN_ref[1:2, :] = h1
    cN_ref[0:1, :] = c0
    cN_ref[1:2, :] = c1


def _permute_gates(w):
    """Reorder the last (4H) dim from PyTorch (i, f, g, o) to (i, f, o, g)."""
    H = w.shape[-1] // 4
    return jnp.concatenate(
        [w[..., 0:2 * H], w[..., 3 * H:4 * H], w[..., 2 * H:3 * H]], axis=-1)


def simple_rnn_forward(x, params):
    """x: (T,) float32. Returns (outputs (T,1,1), (h (2,1,H), c (2,1,H)))."""
    T = x.shape[0]
    H = params["b_inp"].shape[1]
    T_pad = max(8, ((T + 7) // 8) * 8)

    # ---- wrapper-side weight preparation (once per jit trace) ----
    w_ih0_p = _permute_gates(params["w_ih0_t"])   # (H, 4H)
    w_hh0_p = _permute_gates(params["w_hh0_t"])   # (H, 4H)
    b0_p = _permute_gates(params["b0"])           # (1, 4H)
    w_ih1_p = _permute_gates(params["w_ih1_t"])
    w_hh1_p = _permute_gates(params["w_hh1_t"])
    b1_p = _permute_gates(params["b1"])

    # Fold the input Linear(1,H) into layer-0's input weights:
    #   layer_in = x_t * w_inp + b_inp  =>  layer_in @ W_ih0 = x_t * w_eff + (b_inp @ W_ih0)
    w_eff0 = jnp.dot(params["w_inp_t"], w_ih0_p)                 # (1, 4H)
    b_eff0 = jnp.dot(params["b_inp"], w_ih0_p) + b0_p            # (1, 4H)

    # Fuse layer-1's two matmuls: gates1 = [h0, h1] @ concat([W_ih1, W_hh1], axis=0)
    w_cat1 = jnp.concatenate([w_ih1_p, w_hh1_p], axis=0)         # (2H, 4H)

    vmem = pl.BlockSpec(memory_space=pltpu.MemorySpace.VMEM)
    smem = pl.BlockSpec(memory_space=pltpu.MemorySpace.SMEM)

    args = (x,
            w_eff0, b_eff0, w_hh0_p,
            w_cat1, b1_p,
            params["w_out_t"], params["b_out"])

    outputs, hN, cN = pl.pallas_call(
        simple_rnn_kernel,
        out_shape=(
            jax.ShapeDtypeStruct((T, 1), jnp.float32),
            jax.ShapeDtypeStruct((2, H), jnp.float32),
            jax.ShapeDtypeStruct((2, H), jnp.float32),
        ),
        in_specs=[smem] + [vmem] * (len(args) - 1),
        out_specs=(vmem, vmem, vmem),
        scratch_shapes=[pltpu.VMEM((T_pad, H), jnp.float32)],
    )(*args)

    return outputs.reshape(T, 1, 1), (hN.reshape(2, 1, H), cN.reshape(2, 1, H))


def init_params(key, hidden_size):
    """Deterministic init matching PyTorch shapes (weights stored transposed)."""
    H = hidden_size
    ks = jax.random.split(key, 12)
    u = lambda k, shape, bound: jax.random.uniform(
        k, shape, jnp.float32, minval=-bound, maxval=bound)
    b_lin1 = 1.0                      # 1/sqrt(fan_in=1) for inp Linear
    b_lstm = 1.0 / jnp.sqrt(H)        # LSTM / out Linear bound

    params = {
        # inp: Linear(1, H): weight (H,1) -> transposed (1,H); bias (H,) -> (1,H)
        "w_inp_t": u(ks[0], (1, H), b_lin1),
        "b_inp":   u(ks[1], (1, H), b_lin1),
        # LSTM layer 0: W_ih (4H,H) -> (H,4H); W_hh (4H,H) -> (H,4H); b = b_ih + b_hh
        "w_ih0_t": u(ks[2], (H, 4 * H), b_lstm),
        "w_hh0_t": u(ks[3], (H, 4 * H), b_lstm),
        "b0":      u(ks[4], (1, 4 * H), b_lstm) + u(ks[5], (1, 4 * H), b_lstm),
        # LSTM layer 1
        "w_ih1_t": u(ks[6], (H, 4 * H), b_lstm),
        "w_hh1_t": u(ks[7], (H, 4 * H), b_lstm),
        "b1":      u(ks[8], (1, 4 * H), b_lstm) + u(ks[9], (1, 4 * H), b_lstm),
        # out: Linear(H, 1): weight (1,H) -> transposed (H,1); bias (1,) -> (1,1)
        "w_out_t": u(ks[10], (H, 1), b_lstm),
        "b_out":   u(ks[11], (1, 1), b_lstm),
    }
    return params


def reference_forward(x, params):
    """Pure-JAX reference with PyTorch (i, f, g, o) gate order, no fusions."""
    H = params["b_inp"].shape[1]

    def cell(xin, h, c, wih_t, whh_t, b):
        gates = xin @ wih_t + h @ whh_t + b
        i = jax.nn.sigmoid(gates[:, 0:H])
        f = jax.nn.sigmoid(gates[:, H:2 * H])
        g = jnp.tanh(gates[:, 2 * H:3 * H])
        o = jax.nn.sigmoid(gates[:, 3 * H:4 * H])
        c = f * c + i * g
        h = o * jnp.tanh(c)
        return h, c

    h0 = c0 = h1 = c1 = jnp.zeros((1, H), jnp.float32)
    ys = []
    for t in range(x.shape[0]):
        layer_in = x[t] * params["w_inp_t"] + params["b_inp"]
        h0, c0 = cell(layer_in, h0, c0, params["w_ih0_t"], params["w_hh0_t"], params["b0"])
        h1, c1 = cell(h0, h1, c1, params["w_ih1_t"], params["w_hh1_t"], params["b1"])
        ys.append(h1 @ params["w_out_t"] + params["b_out"])
    outputs = jnp.stack(ys).reshape(-1, 1, 1)
    return outputs, (jnp.concatenate([h0, h1], 0).reshape(2, 1, H),
                     jnp.concatenate([c0, c1], 0).reshape(2, 1, H))


if __name__ == "__main__":
    T = 8            # sequence length (steps)
    H = 32           # hidden_size

    key = jax.random.PRNGKey(0)
    k_x, k_p = jax.random.split(key)

    x = jax.random.normal(k_x, (T,), dtype=jnp.float32)   # scalar input per step
    params = init_params(k_p, H)

    fwd = jax.jit(functools.partial(simple_rnn_forward))
    outputs, (h, c) = fwd(x, params)
    jax.block_until_ready((outputs, h, c))

    assert outputs.shape == (T, 1, 1)
    assert h.shape == (2, 1, H) and c.shape == (2, 1, H)

    # Loose-tolerance sanity check vs. an unfused pure-JAX reference (accounts for
    # MXU reduced-precision passes and reassociation from the algebraic fusions).
    ref_out, (ref_h, ref_c) = reference_forward(x, params)
    assert jnp.allclose(outputs, ref_out, atol=5e-2, rtol=5e-2)
    assert jnp.allclose(h, ref_h, atol=5e-2, rtol=5e-2)
    assert jnp.allclose(c, ref_c, atol=5e-2, rtol=5e-2)

    print("KERNEL_OK")
</pallas_src>

<mosaic_0001>
module attributes {stable_mosaic.version = 11 : i64} {
  func.func @simple_rnn_kernel(%arg0: memref<8xf32, #tpu.memory_space<smem>>, %arg1: memref<1x128xf32, #tpu.memory_space<vmem>>, %arg2: memref<1x128xf32, #tpu.memory_space<vmem>>, %arg3: memref<32x128xf32, #tpu.memory_space<vmem>>, %arg4: memref<64x128xf32, #tpu.memory_space<vmem>>, %arg5: memref<1x128xf32, #tpu.memory_space<vmem>>, %arg6: memref<32x1xf32, #tpu.memory_space<vmem>>, %arg7: memref<1x1xf32, #tpu.memory_space<vmem>>, %arg8: memref<8x1xf32, #tpu.memory_space<vmem>>, %arg9: memref<2x32xf32, #tpu.memory_space<vmem>>, %arg10: memref<2x32xf32, #tpu.memory_space<vmem>>, %arg11: memref<8x32xf32, #tpu.memory_space<vmem>>) attributes {dimension_semantics = [], scalar_prefetch = 0 : i64, scratch_operands = 1 : i64, tpu.core_type = #tpu.core_type<tc>} {
    %cst = arith.constant 0.000000e+00 : f32
    %0 = vector.broadcast %cst : f32 to vector<1x32xf32>
    %c0_i32 = arith.constant 0 : i32
    %1 = arith.index_cast %c0_i32 : i32 to index
    %2 = memref.load %arg0[%1] : memref<8xf32, #tpu.memory_space<smem>>
    %c0 = arith.constant 0 : index
    %c0_0 = arith.constant 0 : index
    %3 = vector.load %arg1[%c0, %c0_0] : memref<1x128xf32, #tpu.memory_space<vmem>>, vector<1x128xf32>
    %4 = vector.broadcast %2 : f32 to vector<1x128xf32>
    %5 = arith.mulf %4, %3 : vector<1x128xf32>
    %c0_1 = arith.constant 0 : index
    %c0_2 = arith.constant 0 : index
    %6 = vector.load %arg3[%c0_1, %c0_2] : memref<32x128xf32, #tpu.memory_space<vmem>>, vector<32x128xf32>
    %cst_3 = arith.constant dense<0.000000e+00> : vector<1x128xf32>
    %7 = tpu.matmul %0, %6, %cst_3 {dimension_numbers = #tpu.dot_dimension_numbers<[1], [0], [0], [1], [0, 0, 1, 1], [], []>} : vector<1x32xf32>, vector<32x128xf32>, vector<1x128xf32> -> vector<1x128xf32>
    %8 = arith.addf %5, %7 : vector<1x128xf32>
    %c0_4 = arith.constant 0 : index
    %c0_5 = arith.constant 0 : index
    %9 = vector.load %arg2[%c0_4, %c0_5] : memref<1x128xf32, #tpu.memory_space<vmem>>, vector<1x128xf32>
    %10 = arith.addf %8, %9 : vector<1x128xf32>
    %11 = vector.extract_strided_slice %10 {offsets = [0, 0], sizes = [1, 96], strides = [1, 1]} : vector<1x128xf32> to vector<1x96xf32>
    %12 = arith.negf %11 : vector<1x96xf32>
    %13 = math.exp %12 : vector<1x96xf32>
    %cst_6 = arith.constant 1.000000e+00 : f32
    %14 = vector.broadcast %cst_6 : f32 to vector<1x96xf32>
    %15 = arith.addf %14, %13 : vector<1x96xf32>
    %16 = arith.divf %14, %15 : vector<1x96xf32>
    %17 = vector.extract_strided_slice %10 {offsets = [0, 96], sizes = [1, 32], strides = [1, 1]} : vector<1x128xf32> to vector<1x32xf32>
    %18 = math.tanh %17 : vector<1x32xf32>
    %19 = vector.extract_strided_slice %16 {offsets = [0, 0], sizes = [1, 32], strides = [1, 1]} : vector<1x96xf32> to vector<1x32xf32>
    %20 = vector.extract_strided_slice %16 {offsets = [0, 32], sizes = [1, 32], strides = [1, 1]} : vector<1x96xf32> to vector<1x32xf32>
    %21 = vector.extract_strided_slice %16 {offsets = [0, 64], sizes = [1, 32], strides = [1, 1]} : vector<1x96xf32> to vector<1x32xf32>
    %22 = arith.mulf %20, %0 : vector<1x32xf32>
    %23 = arith.mulf %19, %18 : vector<1x32xf32>
    %24 = arith.addf %22, %23 : vector<1x32xf32>
    %25 = math.tanh %24 : vector<1x32xf32>
    %26 = arith.mulf %21, %25 : vector<1x32xf32>
    %27 = tpu.concatenate %26, %0 in 1 : vector<1x32xf32>, vector<1x32xf32> -> vector<1x64xf32>
    %c0_7 = arith.constant 0 : index
    %c0_8 = arith.constant 0 : index
    %28 = vector.load %arg4[%c0_7, %c0_8] : memref<64x128xf32, #tpu.memory_space<vmem>>, vector<64x128xf32>
    %cst_9 = arith.constant dense<0.000000e+00> : vector<1x128xf32>
    %29 = tpu.matmul %27, %28, %cst_9 {dimension_numbers = #tpu.dot_dimension_numbers<[1], [0], [0], [1], [0, 0, 1, 1], [], []>} : vector<1x64xf32>, vector<64x128xf32>, vector<1x128xf32> -> vector<1x128xf32>
    %c0_10 = arith.constant 0 : index
    %c0_11 = arith.constant 0 : index
    %30 = vector.load %arg5[%c0_10, %c0_11] : memref<1x128xf32, #tpu.memory_space<vmem>>, vector<1x128xf32>
    %31 = arith.addf %29, %30 : vector<1x128xf32>
    %32 = vector.extract_strided_slice %31 {offsets = [0, 0], sizes = [1, 96], strides = [1, 1]} : vector<1x128xf32> to vector<1x96xf32>
    %33 = arith.negf %32 : vector<1x96xf32>
    %34 = math.exp %33 : vector<1x96xf32>
    %cst_12 = arith.constant 1.000000e+00 : f32
    %35 = vector.broadcast %cst_12 : f32 to vector<1x96xf32>
    %36 = arith.addf %35, %34 : vector<1x96xf32>
    %37 = arith.divf %35, %36 : vector<1x96xf32>
    %38 = vector.extract_strided_slice %31 {offsets = [0, 96], sizes = [1, 32], strides = [1, 1]} : vector<1x128xf32> to vector<1x32xf32>
    %39 = math.tanh %38 : vector<1x32xf32>
    %40 = vector.extract_strided_slice %37 {offsets = [0, 0], sizes = [1, 32], strides = [1, 1]} : vector<1x96xf32> to vector<1x32xf32>
    %41 = vector.extract_strided_slice %37 {offsets = [0, 32], sizes = [1, 32], strides = [1, 1]} : vector<1x96xf32> to vector<1x32xf32>
    %42 = vector.extract_strided_slice %37 {offsets = [0, 64], sizes = [1, 32], strides = [1, 1]} : vector<1x96xf32> to vector<1x32xf32>
    %43 = arith.mulf %41, %0 : vector<1x32xf32>
    %44 = arith.mulf %40, %39 : vector<1x32xf32>
    %45 = arith.addf %43, %44 : vector<1x32xf32>
    %46 = math.tanh %45 : vector<1x32xf32>
    %47 = arith.mulf %42, %46 : vector<1x32xf32>
    %48 = arith.index_cast %c0_i32 : i32 to index
    %c0_13 = arith.constant 0 : index
    %49 = vector.load %arg11[%48, %c0_13] : memref<8x32xf32, #tpu.memory_space<vmem>>, vector<1x32xf32>
    tpu.vector_store %arg11[%48, %c0_13], %47 {strides = array<i32>} : memref<8x32xf32, #tpu.memory_space<vmem>>, vector<1x32xf32>,
    %c1_i32 = arith.constant 1 : i32
    %50 = arith.index_cast %c1_i32 : i32 to index
    %51 = memref.load %arg0[%50] : memref<8xf32, #tpu.memory_space<smem>>
    %c0_14 = arith.constant 0 : index
    %c0_15 = arith.constant 0 : index
    %52 = vector.load %arg1[%c0_14, %c0_15] : memref<1x128xf32, #tpu.memory_space<vmem>>, vector<1x128xf32>
    %53 = vector.broadcast %51 : f32 to vector<1x128xf32>
    %54 = arith.mulf %53, %52 : vector<1x128xf32>
    %c0_16 = arith.constant 0 : index
    %c0_17 = arith.constant 0 : index
    %55 = vector.load %arg3[%c0_16, %c0_17] : memref<32x128xf32, #tpu.memory_space<vmem>>, vector<32x128xf32>
    %cst_18 = arith.constant dense<0.000000e+00> : vector<1x128xf32>
    %56 = tpu.matmul %26, %55, %cst_18 {dimension_numbers = #tpu.dot_dimension_numbers<[1], [0], [0], [1], [0, 0, 1, 1], [], []>} : vector<1x32xf32>, vector<32x128xf32>, vector<1x128xf32> -> vector<1x128xf32>
    %57 = arith.addf %54, %56 : vector<1x128xf32>
    %c0_19 = arith.constant 0 : index
    %c0_20 = arith.constant 0 : index
    %58 = vector.load %arg2[%c0_19, %c0_20] : memref<1x128xf32, #tpu.memory_space<vmem>>, vector<1x128xf32>
    %59 = arith.addf %57, %58 : vector<1x128xf32>
    %60 = vector.extract_strided_slice %59 {offsets = [0, 0], sizes = [1, 96], strides = [1, 1]} : vector<1x128xf32> to vector<1x96xf32>
    %61 = arith.negf %60 : vector<1x96xf32>
    %62 = math.exp %61 : vector<1x96xf32>
    %cst_21 = arith.constant 1.000000e+00 : f32
    %63 = vector.broadcast %cst_21 : f32 to vector<1x96xf32>
    %64 = arith.addf %63, %62 : vector<1x96xf32>
    %65 = arith.divf %63, %64 : vector<1x96xf32>
    %66 = vector.extract_strided_slice %59 {offsets = [0, 96], sizes = [1, 32], strides = [1, 1]} : vector<1x128xf32> to vector<1x32xf32>
    %67 = math.tanh %66 : vector<1x32xf32>
    %68 = vector.extract_strided_slice %65 {offsets = [0, 0], sizes = [1, 32], strides = [1, 1]} : vector<1x96xf32> to vector<1x32xf32>
    %69 = vector.extract_strided_slice %65 {offsets = [0, 32], sizes = [1, 32], strides = [1, 1]} : vector<1x96xf32> to vector<1x32xf32>
    %70 = vector.extract_strided_slice %65 {offsets = [0, 64], sizes = [1, 32], strides = [1, 1]} : vector<1x96xf32> to vector<1x32xf32>
    %71 = arith.mulf %69, %24 : vector<1x32xf32>
    %72 = arith.mulf %68, %67 : vector<1x32xf32>
    %73 = arith.addf %71, %72 : vector<1x32xf32>
    %74 = math.tanh %73 : vector<1x32xf32>
    %75 = arith.mulf %70, %74 : vector<1x32xf32>
    %76 = tpu.concatenate %75, %47 in 1 : vector<1x32xf32>, vector<1x32xf32> -> vector<1x64xf32>
    %c0_22 = arith.constant 0 : index
    %c0_23 = arith.constant 0 : index
    %77 = vector.load %arg4[%c0_22, %c0_23] : memref<64x128xf32, #tpu.memory_space<vmem>>, vector<64x128xf32>
    %cst_24 = arith.constant dense<0.000000e+00> : vector<1x128xf32>
    %78 = tpu.matmul %76, %77, %cst_24 {dimension_numbers = #tpu.dot_dimension_numbers<[1], [0], [0], [1], [0, 0, 1, 1], [], []>} : vector<1x64xf32>, vector<64x128xf32>, vector<1x128xf32> -> vector<1x128xf32>
    %c0_25 = arith.constant 0 : index
    %c0_26 = arith.constant 0 : index
    %79 = vector.load %arg5[%c0_25, %c0_26] : memref<1x128xf32, #tpu.memory_space<vmem>>, vector<1x128xf32>
    %80 = arith.addf %78, %79 : vector<1x128xf32>
    %81 = vector.extract_strided_slice %80 {offsets = [0, 0], sizes = [1, 96], strides = [1, 1]} : vector<1x128xf32> to vector<1x96xf32>
    %82 = arith.negf %81 : vector<1x96xf32>
    %83 = math.exp %82 : vector<1x96xf32>
    %cst_27 = arith.constant 1.000000e+00 : f32
    %84 = vector.broadcast %cst_27 : f32 to vector<1x96xf32>
    %85 = arith.addf %84, %83 : vector<1x96xf32>
    %86 = arith.divf %84, %85 : vector<1x96xf32>
    %87 = vector.extract_strided_slice %80 {offsets = [0, 96], sizes = [1, 32], strides = [1, 1]} : vector<1x128xf32> to vector<1x32xf32>
    %88 = math.tanh %87 : vector<1x32xf32>
    %89 = vector.extract_strided_slice %86 {offsets = [0, 0], sizes = [1, 32], strides = [1, 1]} : vector<1x96xf32> to vector<1x32xf32>
    %90 = vector.extract_strided_slice %86 {offsets = [0, 32], sizes = [1, 32], strides = [1, 1]} : vector<1x96xf32> to vector<1x32xf32>
    %91 = vector.extract_strided_slice %86 {offsets = [0, 64], sizes = [1, 32], strides = [1, 1]} : vector<1x96xf32> to vector<1x32xf32>
    %92 = arith.mulf %90, %45 : vector<1x32xf32>
    %93 = arith.mulf %89, %88 : vector<1x32xf32>
    %94 = arith.addf %92, %93 : vector<1x32xf32>
    %95 = math.tanh %94 : vector<1x32xf32>
    %96 = arith.mulf %91, %95 : vector<1x32xf32>
    %97 = arith.index_cast %c1_i32 : i32 to index
    %c0_28 = arith.constant 0 : index
    %98 = vector.load %arg11[%97, %c0_28] : memref<8x32xf32, #tpu.memory_space<vmem>>, vector<1x32xf32>
    tpu.vector_store %arg11[%97, %c0_28], %96 {strides = array<i32>} : memref<8x32xf32, #tpu.memory_space<vmem>>, vector<1x32xf32>,
    %c2_i32 = arith.constant 2 : i32
    %99 = arith.index_cast %c2_i32 : i32 to index
    %100 = memref.load %arg0[%99] : memref<8xf32, #tpu.memory_space<smem>>
    %c0_29 = arith.constant 0 : index
    %c0_30 = arith.constant 0 : index
    %101 = vector.load %arg1[%c0_29, %c0_30] : memref<1x128xf32, #tpu.memory_space<vmem>>, vector<1x128xf32>
    %102 = vector.broadcast %100 : f32 to vector<1x128xf32>
    %103 = arith.mulf %102, %101 : vector<1x128xf32>
    %c0_31 = arith.constant 0 : index
    %c0_32 = arith.constant 0 : index
    %104 = vector.load %arg3[%c0_31, %c0_32] : memref<32x128xf32, #tpu.memory_space<vmem>>, vector<32x128xf32>
    %cst_33 = arith.constant dense<0.000000e+00> : vector<1x128xf32>
    %105 = tpu.matmul %75, %104, %cst_33 {dimension_numbers = #tpu.dot_dimension_numbers<[1], [0], [0], [1], [0, 0, 1, 1], [], []>} : vector<1x32xf32>, vector<32x128xf32>, vector<1x128xf32> -> vector<1x128xf32>
    %106 = arith.addf %103, %105 : vector<1x128xf32>
    %c0_34 = arith.constant 0 : index
    %c0_35 = arith.constant 0 : index
    %107 = vector.load %arg2[%c0_34, %c0_35] : memref<1x128xf32, #tpu.memory_space<vmem>>, vector<1x128xf32>
    %108 = arith.addf %106, %107 : vector<1x128xf32>
    %109 = vector.extract_strided_slice %108 {offsets = [0, 0], sizes = [1, 96], strides = [1, 1]} : vector<1x128xf32> to vector<1x96xf32>
    %110 = arith.negf %109 : vector<1x96xf32>
    %111 = math.exp %110 : vector<1x96xf32>
    %cst_36 = arith.constant 1.000000e+00 : f32
    %112 = vector.broadcast %cst_36 : f32 to vector<1x96xf32>
    %113 = arith.addf %112, %111 : vector<1x96xf32>
    %114 = arith.divf %112, %113 : vector<1x96xf32>
    %115 = vector.extract_strided_slice %108 {offsets = [0, 96], sizes = [1, 32], strides = [1, 1]} : vector<1x128xf32> to vector<1x32xf32>
    %116 = math.tanh %115 : vector<1x32xf32>
    %117 = vector.extract_strided_slice %114 {offsets = [0, 0], sizes = [1, 32], strides = [1, 1]} : vector<1x96xf32> to vector<1x32xf32>
    %118 = vector.extract_strided_slice %114 {offsets = [0, 32], sizes = [1, 32], strides = [1, 1]} : vector<1x96xf32> to vector<1x32xf32>
    %119 = vector.extract_strided_slice %114 {offsets = [0, 64], sizes = [1, 32], strides = [1, 1]} : vector<1x96xf32> to vector<1x32xf32>
    %120 = arith.mulf %118, %73 : vector<1x32xf32>
    %121 = arith.mulf %117, %116 : vector<1x32xf32>
    %122 = arith.addf %120, %121 : vector<1x32xf32>
    %123 = math.tanh %122 : vector<1x32xf32>
    %124 = arith.mulf %119, %123 : vector<1x32xf32>
    %125 = tpu.concatenate %124, %96 in 1 : vector<1x32xf32>, vector<1x32xf32> -> vector<1x64xf32>
    %c0_37 = arith.constant 0 : index
    %c0_38 = arith.constant 0 : index
    %126 = vector.load %arg4[%c0_37, %c0_38] : memref<64x128xf32, #tpu.memory_space<vmem>>, vector<64x128xf32>
    %cst_39 = arith.constant dense<0.000000e+00> : vector<1x128xf32>
    %127 = tpu.matmul %125, %126, %cst_39 {dimension_numbers = #tpu.dot_dimension_numbers<[1], [0], [0], [1], [0, 0, 1, 1], [], []>} : vector<1x64xf32>, vector<64x128xf32>, vector<1x128xf32> -> vector<1x128xf32>
    %c0_40 = arith.constant 0 : index
    %c0_41 = arith.constant 0 : index
    %128 = vector.load %arg5[%c0_40, %c0_41] : memref<1x128xf32, #tpu.memory_space<vmem>>, vector<1x128xf32>
    %129 = arith.addf %127, %128 : vector<1x128xf32>
    %130 = vector.extract_strided_slice %129 {offsets = [0, 0], sizes = [1, 96], strides = [1, 1]} : vector<1x128xf32> to vector<1x96xf32>
    %131 = arith.negf %130 : vector<1x96xf32>
    %132 = math.exp %131 : vector<1x96xf32>
    %cst_42 = arith.constant 1.000000e+00 : f32
    %133 = vector.broadcast %cst_42 : f32 to vector<1x96xf32>
    %134 = arith.addf %133, %132 : vector<1x96xf32>
    %135 = arith.divf %133, %134 : vector<1x96xf32>
    %136 = vector.extract_strided_slice %129 {offsets = [0, 96], sizes = [1, 32], strides = [1, 1]} : vector<1x128xf32> to vector<1x32xf32>
    %137 = math.tanh %136 : vector<1x32xf32>
    %138 = vector.extract_strided_slice %135 {offsets = [0, 0], sizes = [1, 32], strides = [1, 1]} : vector<1x96xf32> to vector<1x32xf32>
    %139 = vector.extract_strided_slice %135 {offsets = [0, 32], sizes = [1, 32], strides = [1, 1]} : vector<1x96xf32> to vector<1x32xf32>
    %140 = vector.extract_strided_slice %135 {offsets = [0, 64], sizes = [1, 32], strides = [1, 1]} : vector<1x96xf32> to vector<1x32xf32>
    %141 = arith.mulf %139, %94 : vector<1x32xf32>
    %142 = arith.mulf %138, %137 : vector<1x32xf32>
    %143 = arith.addf %141, %142 : vector<1x32xf32>
    %144 = math.tanh %143 : vector<1x32xf32>
    %145 = arith.mulf %140, %144 : vector<1x32xf32>
    %146 = arith.index_cast %c2_i32 : i32 to index
    %c0_43 = arith.constant 0 : index
    %147 = vector.load %arg11[%146, %c0_43] : memref<8x32xf32, #tpu.memory_space<vmem>>, vector<1x32xf32>
    tpu.vector_store %arg11[%146, %c0_43], %145 {strides = array<i32>} : memref<8x32xf32, #tpu.memory_space<vmem>>, vector<1x32xf32>,
    %c3_i32 = arith.constant 3 : i32
    %148 = arith.index_cast %c3_i32 : i32 to index
    %149 = memref.load %arg0[%148] : memref<8xf32, #tpu.memory_space<smem>>
    %c0_44 = arith.constant 0 : index
    %c0_45 = arith.constant 0 : index
    %150 = vector.load %arg1[%c0_44, %c0_45] : memref<1x128xf32, #tpu.memory_space<vmem>>, vector<1x128xf32>
    %151 = vector.broadcast %149 : f32 to vector<1x128xf32>
    %152 = arith.mulf %151, %150 : vector<1x128xf32>
    %c0_46 = arith.constant 0 : index
    %c0_47 = arith.constant 0 : index
    %153 = vector.load %arg3[%c0_46, %c0_47] : memref<32x128xf32, #tpu.memory_space<vmem>>, vector<32x128xf32>
    %cst_48 = arith.constant dense<0.000000e+00> : vector<1x128xf32>
    %154 = tpu.matmul %124, %153, %cst_48 {dimension_numbers = #tpu.dot_dimension_numbers<[1], [0], [0], [1], [0, 0, 1, 1], [], []>} : vector<1x32xf32>, vector<32x128xf32>, vector<1x128xf32> -> vector<1x128xf32>
    %155 = arith.addf %152, %154 : vector<1x128xf32>
    %c0_49 = arith.constant 0 : index
    %c0_50 = arith.constant 0 : index
    %156 = vector.load %arg2[%c0_49, %c0_50] : memref<1x128xf32, #tpu.memory_space<vmem>>, vector<1x128xf32>
    %157 = arith.addf %155, %156 : vector<1x128xf32>
    %158 = vector.extract_strided_slice %157 {offsets = [0, 0], sizes = [1, 96], strides = [1, 1]} : vector<1x128xf32> to vector<1x96xf32>
    %159 = arith.negf %158 : vector<1x96xf32>
    %160 = math.exp %159 : vector<1x96xf32>
    %cst_51 = arith.constant 1.000000e+00 : f32
    %161 = vector.broadcast %cst_51 : f32 to vector<1x96xf32>
    %162 = arith.addf %161, %160 : vector<1x96xf32>
    %163 = arith.divf %161, %162 : vector<1x96xf32>
    %164 = vector.extract_strided_slice %157 {offsets = [0, 96], sizes = [1, 32], strides = [1, 1]} : vector<1x128xf32> to vector<1x32xf32>
    %165 = math.tanh %164 : vector<1x32xf32>
    %166 = vector.extract_strided_slice %163 {offsets = [0, 0], sizes = [1, 32], strides = [1, 1]} : vector<1x96xf32> to vector<1x32xf32>
    %167 = vector.extract_strided_slice %163 {offsets = [0, 32], sizes = [1, 32], strides = [1, 1]} : vector<1x96xf32> to vector<1x32xf32>
    %168 = vector.extract_strided_slice %163 {offsets = [0, 64], sizes = [1, 32], strides = [1, 1]} : vector<1x96xf32> to vector<1x32xf32>
    %169 = arith.mulf %167, %122 : vector<1x32xf32>
    %170 = arith.mulf %166, %165 : vector<1x32xf32>
    %171 = arith.addf %169, %170 : vector<1x32xf32>
    %172 = math.tanh %171 : vector<1x32xf32>
    %173 = arith.mulf %168, %172 : vector<1x32xf32>
    %174 = tpu.concatenate %173, %145 in 1 : vector<1x32xf32>, vector<1x32xf32> -> vector<1x64xf32>
    %c0_52 = arith.constant 0 : index
    %c0_53 = arith.constant 0 : index
    %175 = vector.load %arg4[%c0_52, %c0_53] : memref<64x128xf32, #tpu.memory_space<vmem>>, vector<64x128xf32>
    %cst_54 = arith.constant dense<0.000000e+00> : vector<1x128xf32>
    %176 = tpu.matmul %174, %175, %cst_54 {dimension_numbers = #tpu.dot_dimension_numbers<[1], [0], [0], [1], [0, 0, 1, 1], [], []>} : vector<1x64xf32>, vector<64x128xf32>, vector<1x128xf32> -> vector<1x128xf32>
    %c0_55 = arith.constant 0 : index
    %c0_56 = arith.constant 0 : index
    %177 = vector.load %arg5[%c0_55, %c0_56] : memref<1x128xf32, #tpu.memory_space<vmem>>, vector<1x128xf32>
    %178 = arith.addf %176, %177 : vector<1x128xf32>
    %179 = vector.extract_strided_slice %178 {offsets = [0, 0], sizes = [1, 96], strides = [1, 1]} : vector<1x128xf32> to vector<1x96xf32>
    %180 = arith.negf %179 : vector<1x96xf32>
    %181 = math.exp %180 : vector<1x96xf32>
    %cst_57 = arith.constant 1.000000e+00 : f32
    %182 = vector.broadcast %cst_57 : f32 to vector<1x96xf32>
    %183 = arith.addf %182, %181 : vector<1x96xf32>
    %184 = arith.divf %182, %183 : vector<1x96xf32>
    %185 = vector.extract_strided_slice %178 {offsets = [0, 96], sizes = [1, 32], strides = [1, 1]} : vector<1x128xf32> to vector<1x32xf32>
    %186 = math.tanh %185 : vector<1x32xf32>
    %187 = vector.extract_strided_slice %184 {offsets = [0, 0], sizes = [1, 32], strides = [1, 1]} : vector<1x96xf32> to vector<1x32xf32>
    %188 = vector.extract_strided_slice %184 {offsets = [0, 32], sizes = [1, 32], strides = [1, 1]} : vector<1x96xf32> to vector<1x32xf32>
    %189 = vector.extract_strided_slice %184 {offsets = [0, 64], sizes = [1, 32], strides = [1, 1]} : vector<1x96xf32> to vector<1x32xf32>
    %190 = arith.mulf %188, %143 : vector<1x32xf32>
    %191 = arith.mulf %187, %186 : vector<1x32xf32>
    %192 = arith.addf %190, %191 : vector<1x32xf32>
    %193 = math.tanh %192 : vector<1x32xf32>
    %194 = arith.mulf %189, %193 : vector<1x32xf32>
    %195 = arith.index_cast %c3_i32 : i32 to index
    %c0_58 = arith.constant 0 : index
    %196 = vector.load %arg11[%195, %c0_58] : memref<8x32xf32, #tpu.memory_space<vmem>>, vector<1x32xf32>
    tpu.vector_store %arg11[%195, %c0_58], %194 {strides = array<i32>} : memref<8x32xf32, #tpu.memory_space<vmem>>, vector<1x32xf32>,
    %c4_i32 = arith.constant 4 : i32
    %197 = arith.index_cast %c4_i32 : i32 to index
    %198 = memref.load %arg0[%197] : memref<8xf32, #tpu.memory_space<smem>>
    %c0_59 = arith.constant 0 : index
    %c0_60 = arith.constant 0 : index
    %199 = vector.load %arg1[%c0_59, %c0_60] : memref<1x128xf32, #tpu.memory_space<vmem>>, vector<1x128xf32>
    %200 = vector.broadcast %198 : f32 to vector<1x128xf32>
    %201 = arith.mulf %200, %199 : vector<1x128xf32>
    %c0_61 = arith.constant 0 : index
    %c0_62 = arith.constant 0 : index
    %202 = vector.load %arg3[%c0_61, %c0_62] : memref<32x128xf32, #tpu.memory_space<vmem>>, vector<32x128xf32>
    %cst_63 = arith.constant dense<0.000000e+00> : vector<1x128xf32>
    %203 = tpu.matmul %173, %202, %cst_63 {dimension_numbers = #tpu.dot_dimension_numbers<[1], [0], [0], [1], [0, 0, 1, 1], [], []>} : vector<1x32xf32>, vector<32x128xf32>, vector<1x128xf32> -> vector<1x128xf32>
    %204 = arith.addf %201, %203 : vector<1x128xf32>
    %c0_64 = arith.constant 0 : index
    %c0_65 = arith.constant 0 : index
    %205 = vector.load %arg2[%c0_64, %c0_65] : memref<1x128xf32, #tpu.memory_space<vmem>>, vector<1x128xf32>
    %206 = arith.addf %204, %205 : vector<1x128xf32>
    %207 = vector.extract_strided_slice %206 {offsets = [0, 0], sizes = [1, 96], strides = [1, 1]} : vector<1x128xf32> to vector<1x96xf32>
    %208 = arith.negf %207 : vector<1x96xf32>
    %209 = math.exp %208 : vector<1x96xf32>
    %cst_66 = arith.constant 1.000000e+00 : f32
    %210 = vector.broadcast %cst_66 : f32 to vector<1x96xf32>
    %211 = arith.addf %210, %209 : vector<1x96xf32>
    %212 = arith.divf %210, %211 : vector<1x96xf32>
    %213 = vector.extract_strided_slice %206 {offsets = [0, 96], sizes = [1, 32], strides = [1, 1]} : vector<1x128xf32> to vector<1x32xf32>
    %214 = math.tanh %213 : vector<1x32xf32>
    %215 = vector.extract_strided_slice %212 {offsets = [0, 0], sizes = [1, 32], strides = [1, 1]} : vector<1x96xf32> to vector<1x32xf32>
    %216 = vector.extract_strided_slice %212 {offsets = [0, 32], sizes = [1, 32], strides = [1, 1]} : vector<1x96xf32> to vector<1x32xf32>
    %217 = vector.extract_strided_slice %212 {offsets = [0, 64], sizes = [1, 32], strides = [1, 1]} : vector<1x96xf32> to vector<1x32xf32>
    %218 = arith.mulf %216, %171 : vector<1x32xf32>
    %219 = arith.mulf %215, %214 : vector<1x32xf32>
    %220 = arith.addf %218, %219 : vector<1x32xf32>
    %221 = math.tanh %220 : vector<1x32xf32>
    %222 = arith.mulf %217, %221 : vector<1x32xf32>
    %223 = tpu.concatenate %222, %194 in 1 : vector<1x32xf32>, vector<1x32xf32> -> vector<1x64xf32>
    %c0_67 = arith.constant 0 : index
    %c0_68 = arith.constant 0 : index
    %224 = vector.load %arg4[%c0_67, %c0_68] : memref<64x128xf32, #tpu.memory_space<vmem>>, vector<64x128xf32>
    %cst_69 = arith.constant dense<0.000000e+00> : vector<1x128xf32>
    %225 = tpu.matmul %223, %224, %cst_69 {dimension_numbers = #tpu.dot_dimension_numbers<[1], [0], [0], [1], [0, 0, 1, 1], [], []>} : vector<1x64xf32>, vector<64x128xf32>, vector<1x128xf32> -> vector<1x128xf32>
    %c0_70 = arith.constant 0 : index
    %c0_71 = arith.constant 0 : index
    %226 = vector.load %arg5[%c0_70, %c0_71] : memref<1x128xf32, #tpu.memory_space<vmem>>, vector<1x128xf32>
    %227 = arith.addf %225, %226 : vector<1x128xf32>
    %228 = vector.extract_strided_slice %227 {offsets = [0, 0], sizes = [1, 96], strides = [1, 1]} : vector<1x128xf32> to vector<1x96xf32>
    %229 = arith.negf %228 : vector<1x96xf32>
    %230 = math.exp %229 : vector<1x96xf32>
    %cst_72 = arith.constant 1.000000e+00 : f32
    %231 = vector.broadcast %cst_72 : f32 to vector<1x96xf32>
    %232 = arith.addf %231, %230 : vector<1x96xf32>
    %233 = arith.divf %231, %232 : vector<1x96xf32>
    %234 = vector.extract_strided_slice %227 {offsets = [0, 96], sizes = [1, 32], strides = [1, 1]} : vector<1x128xf32> to vector<1x32xf32>
    %235 = math.tanh %234 : vector<1x32xf32>
    %236 = vector.extract_strided_slice %233 {offsets = [0, 0], sizes = [1, 32], strides = [1, 1]} : vector<1x96xf32> to vector<1x32xf32>
    %237 = vector.extract_strided_slice %233 {offsets = [0, 32], sizes = [1, 32], strides = [1, 1]} : vector<1x96xf32> to vector<1x32xf32>
    %238 = vector.extract_strided_slice %233 {offsets = [0, 64], sizes = [1, 32], strides = [1, 1]} : vector<1x96xf32> to vector<1x32xf32>
    %239 = arith.mulf %237, %192 : vector<1x32xf32>
    %240 = arith.mulf %236, %235 : vector<1x32xf32>
    %241 = arith.addf %239, %240 : vector<1x32xf32>
    %242 = math.tanh %241 : vector<1x32xf32>
    %243 = arith.mulf %238, %242 : vector<1x32xf32>
    %244 = arith.index_cast %c4_i32 : i32 to index
    %c0_73 = arith.constant 0 : index
    %245 = vector.load %arg11[%244, %c0_73] : memref<8x32xf32, #tpu.memory_space<vmem>>, vector<1x32xf32>
    tpu.vector_store %arg11[%244, %c0_73], %243 {strides = array<i32>} : memref<8x32xf32, #tpu.memory_space<vmem>>, vector<1x32xf32>,
    %c5_i32 = arith.constant 5 : i32
    %246 = arith.index_cast %c5_i32 : i32 to index
    %247 = memref.load %arg0[%246] : memref<8xf32, #tpu.memory_space<smem>>
    %c0_74 = arith.constant 0 : index
    %c0_75 = arith.constant 0 : index
    %248 = vector.load %arg1[%c0_74, %c0_75] : memref<1x128xf32, #tpu.memory_space<vmem>>, vector<1x128xf32>
    %249 = vector.broadcast %247 : f32 to vector<1x128xf32>
    %250 = arith.mulf %249, %248 : vector<1x128xf32>
    %c0_76 = arith.constant 0 : index
    %c0_77 = arith.constant 0 : index
    %251 = vector.load %arg3[%c0_76, %c0_77] : memref<32x128xf32, #tpu.memory_space<vmem>>, vector<32x128xf32>
    %cst_78 = arith.constant dense<0.000000e+00> : vector<1x128xf32>
    %252 = tpu.matmul %222, %251, %cst_78 {dimension_numbers = #tpu.dot_dimension_numbers<[1], [0], [0], [1], [0, 0, 1, 1], [], []>} : vector<1x32xf32>, vector<32x128xf32>, vector<1x128xf32> -> vector<1x128xf32>
    %253 = arith.addf %250, %252 : vector<1x128xf32>
    %c0_79 = arith.constant 0 : index
    %c0_80 = arith.constant 0 : index
    %254 = vector.load %arg2[%c0_79, %c0_80] : memref<1x128xf32, #tpu.memory_space<vmem>>, vector<1x128xf32>
    %255 = arith.addf %253, %254 : vector<1x128xf32>
    %256 = vector.extract_strided_slice %255 {offsets = [0, 0], sizes = [1, 96], strides = [1, 1]} : vector<1x128xf32> to vector<1x96xf32>
    %257 = arith.negf %256 : vector<1x96xf32>
    %258 = math.exp %257 : vector<1x96xf32>
    %cst_81 = arith.constant 1.000000e+00 : f32
    %259 = vector.broadcast %cst_81 : f32 to vector<1x96xf32>
    %260 = arith.addf %259, %258 : vector<1x96xf32>
    %261 = arith.divf %259, %260 : vector<1x96xf32>
    %262 = vector.extract_strided_slice %255 {offsets = [0, 96], sizes = [1, 32], strides = [1, 1]} : vector<1x128xf32> to vector<1x32xf32>
    %263 = math.tanh %262 : vector<1x32xf32>
    %264 = vector.extract_strided_slice %261 {offsets = [0, 0], sizes = [1, 32], strides = [1, 1]} : vector<1x96xf32> to vector<1x32xf32>
    %265 = vector.extract_strided_slice %261 {offsets = [0, 32], sizes = [1, 32], strides = [1, 1]} : vector<1x96xf32> to vector<1x32xf32>
    %266 = vector.extract_strided_slice %261 {offsets = [0, 64], sizes = [1, 32], strides = [1, 1]} : vector<1x96xf32> to vector<1x32xf32>
    %267 = arith.mulf %265, %220 : vector<1x32xf32>
    %268 = arith.mulf %264, %263 : vector<1x32xf32>
    %269 = arith.addf %267, %268 : vector<1x32xf32>
    %270 = math.tanh %269 : vector<1x32xf32>
    %271 = arith.mulf %266, %270 : vector<1x32xf32>
    %272 = tpu.concatenate %271, %243 in 1 : vector<1x32xf32>, vector<1x32xf32> -> vector<1x64xf32>
    %c0_82 = arith.constant 0 : index
    %c0_83 = arith.constant 0 : index
    %273 = vector.load %arg4[%c0_82, %c0_83] : memref<64x128xf32, #tpu.memory_space<vmem>>, vector<64x128xf32>
    %cst_84 = arith.constant dense<0.000000e+00> : vector<1x128xf32>
    %274 = tpu.matmul %272, %273, %cst_84 {dimension_numbers = #tpu.dot_dimension_numbers<[1], [0], [0], [1], [0, 0, 1, 1], [], []>} : vector<1x64xf32>, vector<64x128xf32>, vector<1x128xf32> -> vector<1x128xf32>
    %c0_85 = arith.constant 0 : index
    %c0_86 = arith.constant 0 : index
    %275 = vector.load %arg5[%c0_85, %c0_86] : memref<1x128xf32, #tpu.memory_space<vmem>>, vector<1x128xf32>
    %276 = arith.addf %274, %275 : vector<1x128xf32>
    %277 = vector.extract_strided_slice %276 {offsets = [0, 0], sizes = [1, 96], strides = [1, 1]} : vector<1x128xf32> to vector<1x96xf32>
    %278 = arith.negf %277 : vector<1x96xf32>
    %279 = math.exp %278 : vector<1x96xf32>
    %cst_87 = arith.constant 1.000000e+00 : f32
    %280 = vector.broadcast %cst_87 : f32 to vector<1x96xf32>
    %281 = arith.addf %280, %279 : vector<1x96xf32>
    %282 = arith.divf %280, %281 : vector<1x96xf32>
    %283 = vector.extract_strided_slice %276 {offsets = [0, 96], sizes = [1, 32], strides = [1, 1]} : vector<1x128xf32> to vector<1x32xf32>
    %284 = math.tanh %283 : vector<1x32xf32>
    %285 = vector.extract_strided_slice %282 {offsets = [0, 0], sizes = [1, 32], strides = [1, 1]} : vector<1x96xf32> to vector<1x32xf32>
    %286 = vector.extract_strided_slice %282 {offsets = [0, 32], sizes = [1, 32], strides = [1, 1]} : vector<1x96xf32> to vector<1x32xf32>
    %287 = vector.extract_strided_slice %282 {offsets = [0, 64], sizes = [1, 32], strides = [1, 1]} : vector<1x96xf32> to vector<1x32xf32>
    %288 = arith.mulf %286, %241 : vector<1x32xf32>
    %289 = arith.mulf %285, %284 : vector<1x32xf32>
    %290 = arith.addf %288, %289 : vector<1x32xf32>
    %291 = math.tanh %290 : vector<1x32xf32>
    %292 = arith.mulf %287, %291 : vector<1x32xf32>
    %293 = arith.index_cast %c5_i32 : i32 to index
    %c0_88 = arith.constant 0 : index
    %294 = vector.load %arg11[%293, %c0_88] : memref<8x32xf32, #tpu.memory_space<vmem>>, vector<1x32xf32>
    tpu.vector_store %arg11[%293, %c0_88], %292 {strides = array<i32>} : memref<8x32xf32, #tpu.memory_space<vmem>>, vector<1x32xf32>,
    %c6_i32 = arith.constant 6 : i32
    %295 = arith.index_cast %c6_i32 : i32 to index
    %296 = memref.load %arg0[%295] : memref<8xf32, #tpu.memory_space<smem>>
    %c0_89 = arith.constant 0 : index
    %c0_90 = arith.constant 0 : index
    %297 = vector.load %arg1[%c0_89, %c0_90] : memref<1x128xf32, #tpu.memory_space<vmem>>, vector<1x128xf32>
    %298 = vector.broadcast %296 : f32 to vector<1x128xf32>
    %299 = arith.mulf %298, %297 : vector<1x128xf32>
    %c0_91 = arith.constant 0 : index
    %c0_92 = arith.constant 0 : index
    %300 = vector.load %arg3[%c0_91, %c0_92] : memref<32x128xf32, #tpu.memory_space<vmem>>, vector<32x128xf32>
    %cst_93 = arith.constant dense<0.000000e+00> : vector<1x128xf32>
    %301 = tpu.matmul %271, %300, %cst_93 {dimension_numbers = #tpu.dot_dimension_numbers<[1], [0], [0], [1], [0, 0, 1, 1], [], []>} : vector<1x32xf32>, vector<32x128xf32>, vector<1x128xf32> -> vector<1x128xf32>
    %302 = arith.addf %299, %301 : vector<1x128xf32>
    %c0_94 = arith.constant 0 : index
    %c0_95 = arith.constant 0 : index
    %303 = vector.load %arg2[%c0_94, %c0_95] : memref<1x128xf32, #tpu.memory_space<vmem>>, vector<1x128xf32>
    %304 = arith.addf %302, %303 : vector<1x128xf32>
    %305 = vector.extract_strided_slice %304 {offsets = [0, 0], sizes = [1, 96], strides = [1, 1]} : vector<1x128xf32> to vector<1x96xf32>
    %306 = arith.negf %305 : vector<1x96xf32>
    %307 = math.exp %306 : vector<1x96xf32>
    %cst_96 = arith.constant 1.000000e+00 : f32
    %308 = vector.broadcast %cst_96 : f32 to vector<1x96xf32>
    %309 = arith.addf %308, %307 : vector<1x96xf32>
    %310 = arith.divf %308, %309 : vector<1x96xf32>
    %311 = vector.extract_strided_slice %304 {offsets = [0, 96], sizes = [1, 32], strides = [1, 1]} : vector<1x128xf32> to vector<1x32xf32>
    %312 = math.tanh %311 : vector<1x32xf32>
    %313 = vector.extract_strided_slice %310 {offsets = [0, 0], sizes = [1, 32], strides = [1, 1]} : vector<1x96xf32> to vector<1x32xf32>
    %314 = vector.extract_strided_slice %310 {offsets = [0, 32], sizes = [1, 32], strides = [1, 1]} : vector<1x96xf32> to vector<1x32xf32>
    %315 = vector.extract_strided_slice %310 {offsets = [0, 64], sizes = [1, 32], strides = [1, 1]} : vector<1x96xf32> to vector<1x32xf32>
    %316 = arith.mulf %314, %269 : vector<1x32xf32>
    %317 = arith.mulf %313, %312 : vector<1x32xf32>
    %318 = arith.addf %316, %317 : vector<1x32xf32>
    %319 = math.tanh %318 : vector<1x32xf32>
    %320 = arith.mulf %315, %319 : vector<1x32xf32>
    %321 = tpu.concatenate %320, %292 in 1 : vector<1x32xf32>, vector<1x32xf32> -> vector<1x64xf32>
    %c0_97 = arith.constant 0 : index
    %c0_98 = arith.constant 0 : index
    %322 = vector.load %arg4[%c0_97, %c0_98] : memref<64x128xf32, #tpu.memory_space<vmem>>, vector<64x128xf32>
    %cst_99 = arith.constant dense<0.000000e+00> : vector<1x128xf32>
    %323 = tpu.matmul %321, %322, %cst_99 {dimension_numbers = #tpu.dot_dimension_numbers<[1], [0], [0], [1], [0, 0, 1, 1], [], []>} : vector<1x64xf32>, vector<64x128xf32>, vector<1x128xf32> -> vector<1x128xf32>
    %c0_100 = arith.constant 0 : index
    %c0_101 = arith.constant 0 : index
    %324 = vector.load %arg5[%c0_100, %c0_101] : memref<1x128xf32, #tpu.memory_space<vmem>>, vector<1x128xf32>
    %325 = arith.addf %323, %324 : vector<1x128xf32>
    %326 = vector.extract_strided_slice %325 {offsets = [0, 0], sizes = [1, 96], strides = [1, 1]} : vector<1x128xf32> to vector<1x96xf32>
    %327 = arith.negf %326 : vector<1x96xf32>
    %328 = math.exp %327 : vector<1x96xf32>
    %cst_102 = arith.constant 1.000000e+00 : f32
    %329 = vector.broadcast %cst_102 : f32 to vector<1x96xf32>
    %330 = arith.addf %329, %328 : vector<1x96xf32>
    %331 = arith.divf %329, %330 : vector<1x96xf32>
    %332 = vector.extract_strided_slice %325 {offsets = [0, 96], sizes = [1, 32], strides = [1, 1]} : vector<1x128xf32> to vector<1x32xf32>
    %333 = math.tanh %332 : vector<1x32xf32>
    %334 = vector.extract_strided_slice %331 {offsets = [0, 0], sizes = [1, 32], strides = [1, 1]} : vector<1x96xf32> to vector<1x32xf32>
    %335 = vector.extract_strided_slice %331 {offsets = [0, 32], sizes = [1, 32], strides = [1, 1]} : vector<1x96xf32> to vector<1x32xf32>
    %336 = vector.extract_strided_slice %331 {offsets = [0, 64], sizes = [1, 32], strides = [1, 1]} : vector<1x96xf32> to vector<1x32xf32>
    %337 = arith.mulf %335, %290 : vector<1x32xf32>
    %338 = arith.mulf %334, %333 : vector<1x32xf32>
    %339 = arith.addf %337, %338 : vector<1x32xf32>
    %340 = math.tanh %339 : vector<1x32xf32>
    %341 = arith.mulf %336, %340 : vector<1x32xf32>
    %342 = arith.index_cast %c6_i32 : i32 to index
    %c0_103 = arith.constant 0 : index
    %343 = vector.load %arg11[%342, %c0_103] : memref<8x32xf32, #tpu.memory_space<vmem>>, vector<1x32xf32>
    tpu.vector_store %arg11[%342, %c0_103], %341 {strides = array<i32>} : memref<8x32xf32, #tpu.memory_space<vmem>>, vector<1x32xf32>,
    %c7_i32 = arith.constant 7 : i32
    %344 = arith.index_cast %c7_i32 : i32 to index
    %345 = memref.load %arg0[%344] : memref<8xf32, #tpu.memory_space<smem>>
    %c0_104 = arith.constant 0 : index
    %c0_105 = arith.constant 0 : index
    %346 = vector.load %arg1[%c0_104, %c0_105] : memref<1x128xf32, #tpu.memory_space<vmem>>, vector<1x128xf32>
    %347 = vector.broadcast %345 : f32 to vector<1x128xf32>
    %348 = arith.mulf %347, %346 : vector<1x128xf32>
    %c0_106 = arith.constant 0 : index
    %c0_107 = arith.constant 0 : index
    %349 = vector.load %arg3[%c0_106, %c0_107] : memref<32x128xf32, #tpu.memory_space<vmem>>, vector<32x128xf32>
    %cst_108 = arith.constant dense<0.000000e+00> : vector<1x128xf32>
    %350 = tpu.matmul %320, %349, %cst_108 {dimension_numbers = #tpu.dot_dimension_numbers<[1], [0], [0], [1], [0, 0, 1, 1], [], []>} : vector<1x32xf32>, vector<32x128xf32>, vector<1x128xf32> -> vector<1x128xf32>
    %351 = arith.addf %348, %350 : vector<1x128xf32>
    %c0_109 = arith.constant 0 : index
    %c0_110 = arith.constant 0 : index
    %352 = vector.load %arg2[%c0_109, %c0_110] : memref<1x128xf32, #tpu.memory_space<vmem>>, vector<1x128xf32>
    %353 = arith.addf %351, %352 : vector<1x128xf32>
    %354 = vector.extract_strided_slice %353 {offsets = [0, 0], sizes = [1, 96], strides = [1, 1]} : vector<1x128xf32> to vector<1x96xf32>
    %355 = arith.negf %354 : vector<1x96xf32>
    %356 = math.exp %355 : vector<1x96xf32>
    %cst_111 = arith.constant 1.000000e+00 : f32
    %357 = vector.broadcast %cst_111 : f32 to vector<1x96xf32>
    %358 = arith.addf %357, %356 : vector<1x96xf32>
    %359 = arith.divf %357, %358 : vector<1x96xf32>
    %360 = vector.extract_strided_slice %353 {offsets = [0, 96], sizes = [1, 32], strides = [1, 1]} : vector<1x128xf32> to vector<1x32xf32>
    %361 = math.tanh %360 : vector<1x32xf32>
    %362 = vector.extract_strided_slice %359 {offsets = [0, 0], sizes = [1, 32], strides = [1, 1]} : vector<1x96xf32> to vector<1x32xf32>
    %363 = vector.extract_strided_slice %359 {offsets = [0, 32], sizes = [1, 32], strides = [1, 1]} : vector<1x96xf32> to vector<1x32xf32>
    %364 = vector.extract_strided_slice %359 {offsets = [0, 64], sizes = [1, 32], strides = [1, 1]} : vector<1x96xf32> to vector<1x32xf32>
    %365 = arith.mulf %363, %318 : vector<1x32xf32>
    %366 = arith.mulf %362, %361 : vector<1x32xf32>
    %367 = arith.addf %365, %366 : vector<1x32xf32>
    %368 = math.tanh %367 : vector<1x32xf32>
    %369 = arith.mulf %364, %368 : vector<1x32xf32>
    %370 = tpu.concatenate %369, %341 in 1 : vector<1x32xf32>, vector<1x32xf32> -> vector<1x64xf32>
    %c0_112 = arith.constant 0 : index
    %c0_113 = arith.constant 0 : index
    %371 = vector.load %arg4[%c0_112, %c0_113] : memref<64x128xf32, #tpu.memory_space<vmem>>, vector<64x128xf32>
    %cst_114 = arith.constant dense<0.000000e+00> : vector<1x128xf32>
    %372 = tpu.matmul %370, %371, %cst_114 {dimension_numbers = #tpu.dot_dimension_numbers<[1], [0], [0], [1], [0, 0, 1, 1], [], []>} : vector<1x64xf32>, vector<64x128xf32>, vector<1x128xf32> -> vector<1x128xf32>
    %c0_115 = arith.constant 0 : index
    %c0_116 = arith.constant 0 : index
    %373 = vector.load %arg5[%c0_115, %c0_116] : memref<1x128xf32, #tpu.memory_space<vmem>>, vector<1x128xf32>
    %374 = arith.addf %372, %373 : vector<1x128xf32>
    %375 = vector.extract_strided_slice %374 {offsets = [0, 0], sizes = [1, 96], strides = [1, 1]} : vector<1x128xf32> to vector<1x96xf32>
    %376 = arith.negf %375 : vector<1x96xf32>
    %377 = math.exp %376 : vector<1x96xf32>
    %cst_117 = arith.constant 1.000000e+00 : f32
    %378 = vector.broadcast %cst_117 : f32 to vector<1x96xf32>
    %379 = arith.addf %378, %377 : vector<1x96xf32>
    %380 = arith.divf %378, %379 : vector<1x96xf32>
    %381 = vector.extract_strided_slice %374 {offsets = [0, 96], sizes = [1, 32], strides = [1, 1]} : vector<1x128xf32> to vector<1x32xf32>
    %382 = math.tanh %381 : vector<1x32xf32>
    %383 = vector.extract_strided_slice %380 {offsets = [0, 0], sizes = [1, 32], strides = [1, 1]} : vector<1x96xf32> to vector<1x32xf32>
    %384 = vector.extract_strided_slice %380 {offsets = [0, 32], sizes = [1, 32], strides = [1, 1]} : vector<1x96xf32> to vector<1x32xf32>
    %385 = vector.extract_strided_slice %380 {offsets = [0, 64], sizes = [1, 32], strides = [1, 1]} : vector<1x96xf32> to vector<1x32xf32>
    %386 = arith.mulf %384, %339 : vector<1x32xf32>
    %387 = arith.mulf %383, %382 : vector<1x32xf32>
    %388 = arith.addf %386, %387 : vector<1x32xf32>
    %389 = math.tanh %388 : vector<1x32xf32>
    %390 = arith.mulf %385, %389 : vector<1x32xf32>
    %391 = arith.index_cast %c7_i32 : i32 to index
    %c0_118 = arith.constant 0 : index
    %392 = vector.load %arg11[%391, %c0_118] : memref<8x32xf32, #tpu.memory_space<vmem>>, vector<1x32xf32>
    tpu.vector_store %arg11[%391, %c0_118], %390 {strides = array<i32>} : memref<8x32xf32, #tpu.memory_space<vmem>>, vector<1x32xf32>,
    %c8_i32 = arith.constant 8 : i32
    %c0_119 = arith.constant 0 : index
    %c0_120 = arith.constant 0 : index
    %393 = vector.load %arg11[%c0_119, %c0_120] : memref<8x32xf32, #tpu.memory_space<vmem>>, vector<8x32xf32>
    %c0_121 = arith.constant 0 : index
    %c0_122 = arith.constant 0 : index
    %394 = vector.load %arg6[%c0_121, %c0_122] : memref<32x1xf32, #tpu.memory_space<vmem>>, vector<32x1xf32>
    %cst_123 = arith.constant dense<0.000000e+00> : vector<8x1xf32>
    %395 = tpu.matmul %393, %394, %cst_123 {dimension_numbers = #tpu.dot_dimension_numbers<[1], [0], [0], [1], [0, 0, 1, 1], [], []>} : vector<8x32xf32>, vector<32x1xf32>, vector<8x1xf32> -> vector<8x1xf32>
    %c0_124 = arith.constant 0 : index
    %c0_125 = arith.constant 0 : index
    %396 = vector.load %arg7[%c0_124, %c0_125] : memref<1x1xf32, #tpu.memory_space<vmem>>, vector<1x1xf32>
    %397 = vector.broadcast %396 : vector<1x1xf32> to vector<8x1xf32>
    %398 = arith.addf %395, %397 : vector<8x1xf32>
    %c0_126 = arith.constant 0 : index
    %c0_127 = arith.constant 0 : index
    %399 = vector.load %arg8[%c0_126, %c0_127] : memref<8x1xf32, #tpu.memory_space<vmem>>, vector<8x1xf32>
    tpu.vector_store %arg8[%c0_126, %c0_127], %398 {strides = array<i32>} : memref<8x1xf32, #tpu.memory_space<vmem>>, vector<8x1xf32>,
    %c0_128 = arith.constant 0 : index
    %c0_129 = arith.constant 0 : index
    %400 = vector.load %arg9[%c0_128, %c0_129] : memref<2x32xf32, #tpu.memory_space<vmem>>, vector<1x32xf32>
    tpu.vector_store %arg9[%c0_128, %c0_129], %369 {strides = array<i32>} : memref<2x32xf32, #tpu.memory_space<vmem>>, vector<1x32xf32>,
    %c1 = arith.constant 1 : index
    %c0_130 = arith.constant 0 : index
    %401 = vector.load %arg9[%c1, %c0_130] : memref<2x32xf32, #tpu.memory_space<vmem>>, vector<1x32xf32>
    tpu.vector_store %arg9[%c1, %c0_130], %390 {strides = array<i32>} : memref<2x32xf32, #tpu.memory_space<vmem>>, vector<1x32xf32>,
    %c0_131 = arith.constant 0 : index
    %c0_132 = arith.constant 0 : index
    %402 = vector.load %arg10[%c0_131, %c0_132] : memref<2x32xf32, #tpu.memory_space<vmem>>, vector<1x32xf32>
    tpu.vector_store %arg10[%c0_131, %c0_132], %367 {strides = array<i32>} : memref<2x32xf32, #tpu.memory_space<vmem>>, vector<1x32xf32>,
    %c1_133 = arith.constant 1 : index
    %c0_134 = arith.constant 0 : index
    %403 = vector.load %arg10[%c1_133, %c0_134] : memref<2x32xf32, #tpu.memory_space<vmem>>, vector<1x32xf32>
    tpu.vector_store %arg10[%c1_133, %c0_134], %388 {strides = array<i32>} : memref<2x32xf32, #tpu.memory_space<vmem>>, vector<1x32xf32>,
    return
  }
}

</mosaic_0001>

<llo_original>
// kernel: simple_rnn_forward.1
$region0: #{simple_rnn_forward.1}
  #allocation0 [shape = 'u32[]', space=smem, size = 0x4, offset = 0x4, fixed_abs, tag = 'smem constant byte address 0x4 - core index']
  #allocation1 [shape = 'u32[144,128]{1,0:T(1,128)}', space=vmem, size = 0x12000, scoped, tag = 'internal scratch']
  #allocation2 [shape = 'f32[8,32]{1,0:T(8,128)}', space=vmem, size = 0x1000, scoped, tag = 'scratch operand']
  #allocation3 [shape = 'f32[1,1]{1,0:T(1,128)S(1)}', space=vmem, size = 0x200, scoped, tag = 'scoped memory for simple_rnn_forward.1']
  %s0 = inlined_call_operand.vmem [shape: f32[8], index: 0, kind: input, shape index: {}]
  %s1 = inlined_call_operand.vmem [shape: f32[1,128], index: 1, kind: input, shape index: {}]
  %s2 = inlined_call_operand.vmem [shape: f32[1,128], index: 2, kind: input, shape index: {}]
  %s3 = inlined_call_operand.vmem [shape: f32[32,128], index: 3, kind: input, shape index: {}]
  %s4 = inlined_call_operand.vmem [shape: f32[64,128], index: 4, kind: input, shape index: {}]
  %s5 = inlined_call_operand.vmem [shape: f32[1,128], index: 5, kind: input, shape index: {}]
  %s6 = inlined_call_operand.vmem [shape: f32[32,1], index: 6, kind: input, shape index: {}]
  %s7 = inlined_call_operand.<no memory space> [shape: f32[1,1], index: 7, kind: input, shape index: {}]
  %s8 = inlined_call_operand.vmem [shape: f32[8,1], index: 8, kind: output, shape index: {0}]
  %s9 = inlined_call_operand.hbm [shape: f32[2,32], index: 9, kind: output, shape index: {1}]
  %s10 = inlined_call_operand.hbm [shape: f32[2,32], index: 10, kind: output, shape index: {2}]
  %11 = xla_tuple %s8, %s9, %s10
  %s12 = sld [smem:[#allocation0]]
  $region62: #{simple_rnn_forward.1} parent=0
    _
  %s14 = ssub.s32 1, %s12
  %s15 = scalar_select 0, %s14, %s12
  %v16 = vstv %s7
  %17 = vst [vmem:[#allocation3] sm:$0x1] %v16
  $region1: #{simple_rnn_forward.1} parent=0
    #allocation4 [shape = 'u8[512]{0}', space=smem, size = 0x200, scoped, tag = 'input window, operand 0, single buffered']
    #allocation5 [shape = 's32[1]{0}', space=sflag, size = 0x4, scoped, tag = 'scoped memory for simple_rnn_forward.1']
    #allocation6 [shape = 's32[1]{0}', space=sflag, size = 0x4, scoped, tag = 'scoped memory for simple_rnn_forward.1']
    #allocation7 [shape = 'u8[1024]{0}', space=vmem, size = 0x400, scoped, tag = 'output window, operand 1, single buffered']
    #allocation8 [shape = 'u8[1024]{0}', space=vmem, size = 0x400, scoped, tag = 'output window, operand 2, single buffered']
    #allocation9 [shape = 's32[1]{0}', space=sflag, size = 0x4, scoped, tag = 'scoped memory for simple_rnn_forward.1']
    %18 = vsyncpa [#allocation6], 0
    %19 = vsyncpa [#allocation5], 0
    %20 = vsyncpa [#allocation9], 0
    // Predicated region
    $region2: #{simple_rnn_forward.1} parent=1 // pred_check
      _
    $region3: #{simple_rnn_forward.1} parent=1 // pred_check_branch
      %22 = sbr.rel (0) target = $region5
    $region4: #{simple_rnn_forward.1} parent=1 // pred_region
      %s24 = ssub.s32 16, 16
      %25 = vsyncadd [#allocation6], %s24
      %s27 = sshll.u32 %s0, 4
      %s28 = int_to_ptr.vmem [resolvable:$true] %s27
      %30 = dma.vmem_to_smem %s28, 16, [#allocation4], [#allocation6]
    $region5: #{simple_rnn_forward.1} parent=1 // pred_fallthru
      _
    // Predicated region
    $region6: #{simple_rnn_forward.1} parent=1 // pred_check
      _
    $region7: #{simple_rnn_forward.1} parent=1 // pred_check_branch
      %32 = sbr.rel (0) target = $region9
    $region8: #{simple_rnn_forward.1} parent=1 // pred_region
      _
    $region9: #{simple_rnn_forward.1} parent=1 // pred_fallthru
      _
    // Predicated region
    $region10: #{simple_rnn_forward.1} parent=1 // pred_check
      _
    $region11: #{simple_rnn_forward.1} parent=1 // pred_check_branch
      %34 = sbr.rel (0) target = $region13
    $region12: #{simple_rnn_forward.1} parent=1 // pred_region
      _
    $region13: #{simple_rnn_forward.1} parent=1 // pred_fallthru
      _
    // Predicated region
    $region14: #{simple_rnn_forward.1} parent=1 // pred_check
      _
    $region15: #{simple_rnn_forward.1} parent=1 // pred_check_branch
      %36 = sbr.rel (0) target = $region17
    $region16: #{simple_rnn_forward.1} parent=1 // pred_region
      _
    $region17: #{simple_rnn_forward.1} parent=1 // pred_fallthru
      _
    // Predicated region
    $region18: #{simple_rnn_forward.1} parent=1 // pred_check
      _
    $region19: #{simple_rnn_forward.1} parent=1 // pred_check_branch
      %38 = sbr.rel (0) target = $region21
    $region20: #{simple_rnn_forward.1} parent=1 // pred_region
      _
    $region21: #{simple_rnn_forward.1} parent=1 // pred_fallthru
      _
    // Predicated region
    $region22: #{simple_rnn_forward.1} parent=1 // pred_check
      _
    $region23: #{simple_rnn_forward.1} parent=1 // pred_check_branch
      %40 = sbr.rel (0) target = $region25
    $region24: #{simple_rnn_forward.1} parent=1 // pred_region
      _
    $region25: #{simple_rnn_forward.1} parent=1 // pred_fallthru
      _
    // Predicated region
    $region26: #{simple_rnn_forward.1} parent=1 // pred_check
      _
    $region27: #{simple_rnn_forward.1} parent=1 // pred_check_branch
      %42 = sbr.rel (0) target = $region29
    $region28: #{simple_rnn_forward.1} parent=1 // pred_region
      _
    $region29: #{simple_rnn_forward.1} parent=1 // pred_fallthru
      _
    // Predicated region
    $region30: #{simple_rnn_forward.1} parent=1 // pred_check
      _
    $region31: #{simple_rnn_forward.1} parent=1 // pred_check_branch
      %44 = sbr.rel (0) target = $region33
    $region32: #{simple_rnn_forward.1} parent=1 // pred_region
      _
    $region33: #{simple_rnn_forward.1} parent=1 // pred_fallthru
      _
    // Predicated region
    $region34: #{simple_rnn_forward.1} parent=1 // pred_check
      _
    $region35: #{simple_rnn_forward.1} parent=1 // pred_check_branch
      %46 = sbr.rel (0) target = $region37
    $region36: #{simple_rnn_forward.1} parent=1 // pred_region
      %47 = dma.done [#allocation6], 16
    $region37: #{simple_rnn_forward.1} parent=1 // pred_fallthru
      _
    %48 = sfence
    %s49 = sld [smem:[#allocation4]]
    %v50 = vld [vmem:[%s1] sm:$0x1]
    %v51 = vstv %s49
    %v52 = vmul.f32 %v51, %v50
    %v53 = vld [vmem:[%s3] sm:$0xff]
    %v54 = vld [vmem:[%s3 + $0x8] sm:$0xff]
    %v55 = vld [vmem:[%s3 + $0x10] sm:$0xff]
    %v56 = vld [vmem:[%s3 + $0x18] sm:$0xff]
    %vm57 = vcmask 261120
    %v59 = vsel %vm57, 0.0, 0
    %61 = vmatprep.subr.mxu0 0.0
    %62 = vmatpush1.msra.mxu0 0.0
    %63 = vmatprep.subr.mxu0 0.0
    %64 = vmatpush1.msra.mxu0 0.0
    %65 = vmatprep.subr.mxu0 0.0
    %66 = vmatpush1.msra.mxu0 0.0
    %67 = vmatprep.subr.mxu0 0.0
    %68 = vmatpush1.msra.mxu0 0.0
    %69 = vmatprep.subr.mxu0 0.0
    %70 = vmatpush1.msra.mxu0 0.0
    %71 = vmatprep.subr.mxu0 0.0
    %72 = vmatpush1.msra.mxu0 0.0
    %73 = vmatprep.subr.mxu0 0.0
    %74 = vmatpush1.msra.mxu0 0.0
    %75 = vmatprep.subr.mxu0 0.0
    %76 = vmatpush1.msra.mxu0 0.0
    %77 = vmatprep.subr.mxu0 0.0
    %78 = vmatpush1.msra.mxu0 0.0
    %79 = vmatprep.subr.mxu0 0.0
    %80 = vmatpush1.msra.mxu0 0.0
    %81 = vmatprep.subr.mxu0 0.0
    %82 = vmatpush1.msra.mxu0 0.0
    %83 = vmatprep.subr.mxu0 0.0
    %84 = vmatpush1.msra.mxu0 0.0
    %85 = vmatprep.subr.mxu0 0.0
    %86 = vmatpush1.msra.mxu0 %v56
    %87 = vmatprep.subr.mxu0 0.0
    %88 = vmatpush1.msra.mxu0 %v55
    %89 = vmatprep.subr.mxu0 0.0
    %90 = vmatpush1.msra.mxu0 %v54
    %91 = vmatprep.subr.mxu0 0.0
    %92 = vmatpush1.msra.mxu0 %v53
    %93 = vmatprep.subr.mxu0 0.0
    %94 = vmatpush2.msra.mxu0 0.0
    %95 = vmatprep.subr.mxu0 0.0
    %96 = vmatpush2.msra.mxu0 0.0
    %97 = vmatprep.subr.mxu0 0.0
    %98 = vmatpush2.msra.mxu0 0.0
    %99 = vmatprep.subr.mxu0 0.0
    %100 = vmatpush2.msra.mxu0 0.0
    %101 = vmatprep.subr.mxu0 0.0
    %102 = vmatpush2.msra.mxu0 0.0
    %103 = vmatprep.subr.mxu0 0.0
    %104 = vmatpush2.msra.mxu0 0.0
    %105 = vmatprep.subr.mxu0 0.0
    %106 = vmatpush2.msra.mxu0 0.0
    %107 = vmatprep.subr.mxu0 0.0
    %108 = vmatpush2.msra.mxu0 0.0
    %109 = vmatprep.subr.mxu0 0.0
    %110 = vmatpush2.msra.mxu0 0.0
    %111 = vmatprep.subr.mxu0 0.0
    %112 = vmatpush2.msra.mxu0 0.0
    %113 = vmatprep.subr.mxu0 0.0
    %114 = vmatpush2.msra.mxu0 0.0
    %115 = vmatprep.subr.mxu0 0.0
    %116 = vmatpush2.msra.mxu0 0.0
    %117 = vmatprep.subr.mxu0 0.0
    %118 = vmatpush2.msra.mxu0 0.0
    %119 = vmatprep.subr.mxu0 0.0
    %120 = vmatpush2.msra.mxu0 0.0
    %121 = vmatprep.subr.mxu0 0.0
    %122 = vmatpush2.msra.mxu0 0.0
    %123 = vmatprep.subr.mxu0 0.0
    %124 = vmatpush2.msra.mxu0 0.0
    %125 = vmatprep.mubr.f32.mxu0 0.0
    %126 = vmatmul.mubr.f32.gmra.mxu0 %v59
    %v127 = vpop.f32.mrf.mxu0
    %v128 = vadd.f32 0.0, %v127
    %v129 = vpop.f32.mrf.mxu0
    %130 = vdwg.mxu0
    %v131 = vadd.f32 %v52, %v128
    %v132 = vld [vmem:[%s2] sm:$0x1]
    %v133 = vadd.f32 %v131, %v132
    %v134 = vxor.u32 %v133, 2147483648
    %v135 = vmul.f32 %v134, 1.442695
    %v136 = vpow.pop %v135
    %v137 = vadd.f32 %v136, 1.0
    %v138 = vrcp.pop %v137
    %v139 = vmul.f32 1.0, %v138
    %v140 = vtanh.pop %v133
    %v141 = vmul.f32 %v139, 0.0
    %143 = vrot.lane.b32.xlu0 %v140, 32
    %v144 = vpop.permute.xlu0 %143
    %v146 = vmul.f32 %v139, %v144
    %148 = vrot.lane.b32.xlu0 %v146, 32
    %v149 = vpop.permute.xlu0 %148
    %v151 = vadd.f32 %v141, %v149
    %v152 = vtanh.pop %v151
    %154 = vrot.lane.b32.xlu0 %v152, 32
    %v155 = vpop.permute.xlu0 %154
    %v157 = vmul.f32 %v139, %v155
    %v159 = vlaneseq
    %v160 = vshrl.u32 %v159, 7
    %v161 = vsub.s32 0, %v160
    %v162 = vrot.slane %v157, %v161
    %163 = vrot.lane.b32.xlu0 %v162, 64
    %v164 = vpop.permute.xlu0 %163
    %v166 = vsel %vm57, %v164, 0.0
    %v167 = vld [vmem:[%s4] sm:$0xff]
    %v168 = vld [vmem:[%s4 + $0x8] sm:$0xff]
    %v169 = vld [vmem:[%s4 + $0x10] sm:$0xff]
    %v170 = vld [vmem:[%s4 + $0x18] sm:$0xff]
    %v171 = vld [vmem:[%s4 + $0x20] sm:$0xff]
    %v172 = vld [vmem:[%s4 + $0x28] sm:$0xff]
    %v173 = vld [vmem:[%s4 + $0x30] sm:$0xff]
    %v174 = vld [vmem:[%s4 + $0x38] sm:$0xff]
    %v175 = vld [vmem:[%s5] sm:$0x1]
    %vm176 = vcmask 523264
    %v178 = vsel %vm176, %v166, 0
    %180 = vmatprep.subr.mxu0 0.0
    %181 = vmatpush1.msra.mxu0 0.0
    %182 = vmatprep.subr.mxu0 0.0
    %183 = vmatpush1.msra.mxu0 0.0
    %184 = vmatprep.subr.mxu0 0.0
    %185 = vmatpush1.msra.mxu0 0.0
    %186 = vmatprep.subr.mxu0 0.0
    %187 = vmatpush1.msra.mxu0 0.0
    %188 = vmatprep.subr.mxu0 0.0
    %189 = vmatpush1.msra.mxu0 0.0
    %190 = vmatprep.subr.mxu0 0.0
    %191 = vmatpush1.msra.mxu0 0.0
    %192 = vmatprep.subr.mxu0 0.0
    %193 = vmatpush1.msra.mxu0 0.0
    %194 = vmatprep.subr.mxu0 0.0
    %195 = vmatpush1.msra.mxu0 0.0
    %196 = vmatprep.subr.mxu0 0.0
    %197 = vmatpush1.msra.mxu0 %v174
    %198 = vmatprep.subr.mxu0 0.0
    %199 = vmatpush1.msra.mxu0 %v173
    %200 = vmatprep.subr.mxu0 0.0
    %201 = vmatpush1.msra.mxu0 %v172
    %202 = vmatprep.subr.mxu0 0.0
    %203 = vmatpush1.msra.mxu0 %v171
    %204 = vmatprep.subr.mxu0 0.0
    %205 = vmatpush1.msra.mxu0 %v170
    %206 = vmatprep.subr.mxu0 0.0
    %207 = vmatpush1.msra.mxu0 %v169
    %208 = vmatprep.subr.mxu0 0.0
    %209 = vmatpush1.msra.mxu0 %v168
    %210 = vmatprep.subr.mxu0 0.0
    %211 = vmatpush1.msra.mxu0 %v167
    %212 = vmatprep.subr.mxu0 0.0
    %213 = vmatpush2.msra.mxu0 0.0
    %214 = vmatprep.subr.mxu0 0.0
    %215 = vmatpush2.msra.mxu0 0.0
    %216 = vmatprep.subr.mxu0 0.0
    %217 = vmatpush2.msra.mxu0 0.0
    %218 = vmatprep.subr.mxu0 0.0
    %219 = vmatpush2.msra.mxu0 0.0
    %220 = vmatprep.subr.mxu0 0.0
    %221 = vmatpush2.msra.mxu0 0.0
    %222 = vmatprep.subr.mxu0 0.0
    %223 = vmatpush2.msra.mxu0 0.0
    %224 = vmatprep.subr.mxu0 0.0
    %225 = vmatpush2.msra.mxu0 0.0
    %226 = vmatprep.subr.mxu0 0.0
    %227 = vmatpush2.msra.mxu0 0.0
    %228 = vmatprep.subr.mxu0 0.0
    %229 = vmatpush2.msra.mxu0 0.0
    %230 = vmatprep.subr.mxu0 0.0
    %231 = vmatpush2.msra.mxu0 0.0
    %232 = vmatprep.subr.mxu0 0.0
    %233 = vmatpush2.msra.mxu0 0.0
    %234 = vmatprep.subr.mxu0 0.0
    %235 = vmatpush2.msra.mxu0 0.0
    %236 = vmatprep.subr.mxu0 0.0
    %237 = vmatpush2.msra.mxu0 0.0
    %238 = vmatprep.subr.mxu0 0.0
    %239 = vmatpush2.msra.mxu0 0.0
    %240 = vmatprep.subr.mxu0 0.0
    %241 = vmatpush2.msra.mxu0 0.0
    %242 = vmatprep.subr.mxu0 0.0
    %243 = vmatpush2.msra.mxu0 0.0
    %244 = vmatprep.mubr.f32.mxu0 0.0
    %245 = vmatmul.mubr.f32.gmra.mxu0 %v178
    %v246 = vpop.f32.mrf.mxu0
    %v247 = vadd.f32 %v175, %v246
    %v248 = vpop.f32.mrf.mxu0
    %249 = vdwg.mxu0
    %v250 = vxor.u32 %v247, 2147483648
    %v251 = vmul.f32 %v250, 1.442695
    %v252 = vpow.pop %v251
    %v253 = vadd.f32 %v252, 1.0
    %v254 = vrcp.pop %v253
    %v255 = vmul.f32 1.0, %v254
    %v256 = vtanh.pop %v247
    %v257 = vmul.f32 %v255, 0.0
    %259 = vrot.lane.b32.xlu0 %v256, 32
    %v260 = vpop.permute.xlu0 %259
    %v262 = vmul.f32 %v255, %v260
    %264 = vrot.lane.b32.xlu0 %v262, 32
    %v265 = vpop.permute.xlu0 %264
    %v267 = vadd.f32 %v257, %v265
    %v268 = vtanh.pop %v267
    %270 = vrot.lane.b32.xlu0 %v268, 32
    %v271 = vpop.permute.xlu0 %270
    %v273 = vmul.f32 %v255, %v271
    %275 = vrot.lane.b32.xlu0 %v273, 64
    %v276 = vpop.permute.xlu0 %275
    %vm278 = vcmask 253952
    %279 = vst.msk [vmem:[#allocation2] sm:$0x1] %vm278, %v276
    %s280 = sld [smem:[#allocation4 + $0x1]]
    %v281 = vld [vmem:[%s1] sm:$0x1]
    %v282 = vstv %s280
    %v283 = vmul.f32 %v282, %v281
    %v284 = vld [vmem:[%s3] sm:$0xff]
    %v285 = vld [vmem:[%s3 + $0x8] sm:$0xff]
    %v286 = vld [vmem:[%s3 + $0x10] sm:$0xff]
    %v287 = vld [vmem:[%s3 + $0x18] sm:$0xff]
    %v288 = vsel %vm57, %v164, 0
    %290 = vmatprep.subr.mxu0 0.0
    %291 = vmatpush1.msra.mxu0 0.0
    %292 = vmatprep.subr.mxu0 0.0
    %293 = vmatpush1.msra.mxu0 0.0
    %294 = vmatprep.subr.mxu0 0.0
    %295 = vmatpush1.msra.mxu0 0.0
    %296 = vmatprep.subr.mxu0 0.0
    %297 = vmatpush1.msra.mxu0 0.0
    %298 = vmatprep.subr.mxu0 0.0
    %299 = vmatpush1.msra.mxu0 0.0
    %300 = vmatprep.subr.mxu0 0.0
    %301 = vmatpush1.msra.mxu0 0.0
    %302 = vmatprep.subr.mxu0 0.0
    %303 = vmatpush1.msra.mxu0 0.0
    %304 = vmatprep.subr.mxu0 0.0
    %305 = vmatpush1.msra.mxu0 0.0
    %306 = vmatprep.subr.mxu0 0.0
    %307 = vmatpush1.msra.mxu0 0.0
    %308 = vmatprep.subr.mxu0 0.0
    %309 = vmatpush1.msra.mxu0 0.0
    %310 = vmatprep.subr.mxu0 0.0
    %311 = vmatpush1.msra.mxu0 0.0
    %312 = vmatprep.subr.mxu0 0.0
    %313 = vmatpush1.msra.mxu0 0.0
    %314 = vmatprep.subr.mxu0 0.0
    %315 = vmatpush1.msra.mxu0 %v287
    %316 = vmatprep.subr.mxu0 0.0
    %317 = vmatpush1.msra.mxu0 %v286
    %318 = vmatprep.subr.mxu0 0.0
    %319 = vmatpush1.msra.mxu0 %v285
    %320 = vmatprep.subr.mxu0 0.0
    %321 = vmatpush1.msra.mxu0 %v284
    %322 = vmatprep.subr.mxu0 0.0
    %323 = vmatpush2.msra.mxu0 0.0
    %324 = vmatprep.subr.mxu0 0.0
    %325 = vmatpush2.msra.mxu0 0.0
    %326 = vmatprep.subr.mxu0 0.0
    %327 = vmatpush2.msra.mxu0 0.0
    %328 = vmatprep.subr.mxu0 0.0
    %329 = vmatpush2.msra.mxu0 0.0
    %330 = vmatprep.subr.mxu0 0.0
    %331 = vmatpush2.msra.mxu0 0.0
    %332 = vmatprep.subr.mxu0 0.0
    %333 = vmatpush2.msra.mxu0 0.0
    %334 = vmatprep.subr.mxu0 0.0
    %335 = vmatpush2.msra.mxu0 0.0
    %336 = vmatprep.subr.mxu0 0.0
    %337 = vmatpush2.msra.mxu0 0.0
    %338 = vmatprep.subr.mxu0 0.0
    %339 = vmatpush2.msra.mxu0 0.0
    %340 = vmatprep.subr.mxu0 0.0
    %341 = vmatpush2.msra.mxu0 0.0
    %342 = vmatprep.subr.mxu0 0.0
    %343 = vmatpush2.msra.mxu0 0.0
    %344 = vmatprep.subr.mxu0 0.0
    %345 = vmatpush2.msra.mxu0 0.0
    %346 = vmatprep.subr.mxu0 0.0
    %347 = vmatpush2.msra.mxu0 0.0
    %348 = vmatprep.subr.mxu0 0.0
    %349 = vmatpush2.msra.mxu0 0.0
    %350 = vmatprep.subr.mxu0 0.0
    %351 = vmatpush2.msra.mxu0 0.0
    %352 = vmatprep.subr.mxu0 0.0
    %353 = vmatpush2.msra.mxu0 0.0
    %354 = vmatprep.mubr.f32.mxu0 0.0
    %355 = vmatmul.mubr.f32.gmra.mxu0 %v288
    %v356 = vpop.f32.mrf.mxu0
    %v357 = vadd.f32 0.0, %v356
    %v358 = vpop.f32.mrf.mxu0
    %359 = vdwg.mxu0
    %v360 = vadd.f32 %v283, %v357
    %v361 = vld [vmem:[%s2] sm:$0x1]
    %v362 = vadd.f32 %v360, %v361
    %v363 = vxor.u32 %v362, 2147483648
    %v364 = vmul.f32 %v363, 1.442695
    %v365 = vpow.pop %v364
    %v366 = vadd.f32 %v365, 1.0
    %v367 = vrcp.pop %v366
    %v368 = vmul.f32 1.0, %v367
    %v369 = vtanh.pop %v362
    %v370 = vmul.f32 %v368, %v151
    %372 = vrot.lane.b32.xlu0 %v369, 32
    %v373 = vpop.permute.xlu0 %372
    %v375 = vmul.f32 %v368, %v373
    %377 = vrot.lane.b32.xlu0 %v375, 32
    %v378 = vpop.permute.xlu0 %377
    %v380 = vadd.f32 %v370, %v378
    %v381 = vtanh.pop %v380
    %383 = vrot.lane.b32.xlu0 %v381, 32
    %v384 = vpop.permute.xlu0 %383
    %v386 = vmul.f32 %v368, %v384
    %v388 = vlaneseq
    %v389 = vshrl.u32 %v388, 7
    %v390 = vsub.s32 0, %v389
    %v391 = vrot.slane %v386, %v390
    %392 = vrot.lane.b32.xlu0 %v391, 64
    %v393 = vpop.permute.xlu0 %392
    %395 = vrot.lane.b32.xlu0 %v273, 96
    %v396 = vpop.permute.xlu0 %395
    %v398 = vsel %vm57, %v393, %v396
    %v399 = vld [vmem:[%s4] sm:$0xff]
    %v400 = vld [vmem:[%s4 + $0x8] sm:$0xff]
    %v401 = vld [vmem:[%s4 + $0x10] sm:$0xff]
    %v402 = vld [vmem:[%s4 + $0x18] sm:$0xff]
    %v403 = vld [vmem:[%s4 + $0x20] sm:$0xff]
    %v404 = vld [vmem:[%s4 + $0x28] sm:$0xff]
    %v405 = vld [vmem:[%s4 + $0x30] sm:$0xff]
    %v406 = vld [vmem:[%s4 + $0x38] sm:$0xff]
    %v407 = vld [vmem:[%s5] sm:$0x1]
    %v409 = vsel %vm176, %v398, 0
    %411 = vmatprep.subr.mxu0 0.0
    %412 = vmatpush1.msra.mxu0 0.0
    %413 = vmatprep.subr.mxu0 0.0
    %414 = vmatpush1.msra.mxu0 0.0
    %415 = vmatprep.subr.mxu0 0.0
    %416 = vmatpush1.msra.mxu0 0.0
    %417 = vmatprep.subr.mxu0 0.0
    %418 = vmatpush1.msra.mxu0 0.0
    %419 = vmatprep.subr.mxu0 0.0
    %420 = vmatpush1.msra.mxu0 0.0
    %421 = vmatprep.subr.mxu0 0.0
    %422 = vmatpush1.msra.mxu0 0.0
    %423 = vmatprep.subr.mxu0 0.0
    %424 = vmatpush1.msra.mxu0 0.0
    %425 = vmatprep.subr.mxu0 0.0
    %426 = vmatpush1.msra.mxu0 0.0
    %427 = vmatprep.subr.mxu0 0.0
    %428 = vmatpush1.msra.mxu0 %v406
    %429 = vmatprep.subr.mxu0 0.0
    %430 = vmatpush1.msra.mxu0 %v405
    %431 = vmatprep.subr.mxu0 0.0
    %432 = vmatpush1.msra.mxu0 %v404
    %433 = vmatprep.subr.mxu0 0.0
    %434 = vmatpush1.msra.mxu0 %v403
    %435 = vmatprep.subr.mxu0 0.0
    %436 = vmatpush1.msra.mxu0 %v402
    %437 = vmatprep.subr.mxu0 0.0
    %438 = vmatpush1.msra.mxu0 %v401
    %439 = vmatprep.subr.mxu0 0.0
    %440 = vmatpush1.msra.mxu0 %v400
    %441 = vmatprep.subr.mxu0 0.0
    %442 = vmatpush1.msra.mxu0 %v399
    %443 = vmatprep.subr.mxu0 0.0
    %444 = vmatpush2.msra.mxu0 0.0
    %445 = vmatprep.subr.mxu0 0.0
    %446 = vmatpush2.msra.mxu0 0.0
    %447 = vmatprep.subr.mxu0 0.0
    %448 = vmatpush2.msra.mxu0 0.0
    %449 = vmatprep.subr.mxu0 0.0
    %450 = vmatpush2.msra.mxu0 0.0
    %451 = vmatprep.subr.mxu0 0.0
    %452 = vmatpush2.msra.mxu0 0.0
    %453 = vmatprep.subr.mxu0 0.0
    %454 = vmatpush2.msra.mxu0 0.0
    %455 = vmatprep.subr.mxu0 0.0
    %456 = vmatpush2.msra.mxu0 0.0
    %457 = vmatprep.subr.mxu0 0.0
    %458 = vmatpush2.msra.mxu0 0.0
    %459 = vmatprep.subr.mxu0 0.0
    %460 = vmatpush2.msra.mxu0 0.0
    %461 = vmatprep.subr.mxu0 0.0
    %462 = vmatpush2.msra.mxu0 0.0
    %463 = vmatprep.subr.mxu0 0.0
    %464 = vmatpush2.msra.mxu0 0.0
    %465 = vmatprep.subr.mxu0 0.0
    %466 = vmatpush2.msra.mxu0 0.0
    %467 = vmatprep.subr.mxu0 0.0
    %468 = vmatpush2.msra.mxu0 0.0
    %469 = vmatprep.subr.mxu0 0.0
    %470 = vmatpush2.msra.mxu0 0.0
    %471 = vmatprep.subr.mxu0 0.0
    %472 = vmatpush2.msra.mxu0 0.0
    %473 = vmatprep.subr.mxu0 0.0
    %474 = vmatpush2.msra.mxu0 0.0
    %475 = vmatprep.mubr.f32.mxu0 0.0
    %476 = vmatmul.mubr.f32.gmra.mxu0 %v409
    %v477 = vpop.f32.mrf.mxu0
    %v478 = vadd.f32 %v407, %v477
    %v479 = vpop.f32.mrf.mxu0
    %480 = vdwg.mxu0
    %v481 = vxor.u32 %v478, 2147483648
    %v482 = vmul.f32 %v481, 1.442695
    %v483 = vpow.pop %v482
    %v484 = vadd.f32 %v483, 1.0
    %v485 = vrcp.pop %v484
    %v486 = vmul.f32 1.0, %v485
    %v487 = vtanh.pop %v478
    %v488 = vmul.f32 %v486, %v267
    %490 = vrot.lane.b32.xlu0 %v487, 32
    %v491 = vpop.permute.xlu0 %490
    %v493 = vmul.f32 %v486, %v491
    %495 = vrot.lane.b32.xlu0 %v493, 32
    %v496 = vpop.permute.xlu0 %495
    %v498 = vadd.f32 %v488, %v496
    %v499 = vtanh.pop %v498
    %501 = vrot.lane.b32.xlu0 %v499, 32
    %v502 = vpop.permute.xlu0 %501
    %v504 = vmul.f32 %v486, %v502
    %506 = vrot.lane.b32.xlu0 %v504, 64
    %v507 = vpop.permute.xlu0 %506
    %509 = vst.msk [vmem:[#allocation2 + $0x1] sm:$0x1] %vm278, %v507
    %s510 = sld [smem:[#allocation4 + $0x2]]
    %v511 = vld [vmem:[%s1] sm:$0x1]
    %v512 = vstv %s510
    %v513 = vmul.f32 %v512, %v511
    %v514 = vld [vmem:[%s3] sm:$0xff]
    %v515 = vld [vmem:[%s3 + $0x8] sm:$0xff]
    %v516 = vld [vmem:[%s3 + $0x10] sm:$0xff]
    %v517 = vld [vmem:[%s3 + $0x18] sm:$0xff]
    %v518 = vsel %vm57, %v393, 0
    %520 = vmatprep.subr.mxu0 0.0
    %521 = vmatpush1.msra.mxu0 0.0
    %522 = vmatprep.subr.mxu0 0.0
    %523 = vmatpush1.msra.mxu0 0.0
    %524 = vmatprep.subr.mxu0 0.0
    %525 = vmatpush1.msra.mxu0 0.0
    %526 = vmatprep.subr.mxu0 0.0
    %527 = vmatpush1.msra.mxu0 0.0
    %528 = vmatprep.subr.mxu0 0.0
    %529 = vmatpush1.msra.mxu0 0.0
    %530 = vmatprep.subr.mxu0 0.0
    %531 = vmatpush1.msra.mxu0 0.0
    %532 = vmatprep.subr.mxu0 0.0
    %533 = vmatpush1.msra.mxu0 0.0
    %534 = vmatprep.subr.mxu0 0.0
    %535 = vmatpush1.msra.mxu0 0.0
    %536 = vmatprep.subr.mxu0 0.0
    %537 = vmatpush1.msra.mxu0 0.0
    %538 = vmatprep.subr.mxu0 0.0
    %539 = vmatpush1.msra.mxu0 0.0
    %540 = vmatprep.subr.mxu0 0.0
    %541 = vmatpush1.msra.mxu0 0.0
    %542 = vmatprep.subr.mxu0 0.0
    %543 = vmatpush1.msra.mxu0 0.0
    %544 = vmatprep.subr.mxu0 0.0
    %545 = vmatpush1.msra.mxu0 %v517
    %546 = vmatprep.subr.mxu0 0.0
    %547 = vmatpush1.msra.mxu0 %v516
    %548 = vmatprep.subr.mxu0 0.0
    %549 = vmatpush1.msra.mxu0 %v515
    %550 = vmatprep.subr.mxu0 0.0
    %551 = vmatpush1.msra.mxu0 %v514
    %552 = vmatprep.subr.mxu0 0.0
    %553 = vmatpush2.msra.mxu0 0.0
    %554 = vmatprep.subr.mxu0 0.0
    %555 = vmatpush2.msra.mxu0 0.0
    %556 = vmatprep.subr.mxu0 0.0
    %557 = vmatpush2.msra.mxu0 0.0
    %558 = vmatprep.subr.mxu0 0.0
    %559 = vmatpush2.msra.mxu0 0.0
    %560 = vmatprep.subr.mxu0 0.0
    %561 = vmatpush2.msra.mxu0 0.0
    %562 = vmatprep.subr.mxu0 0.0
    %563 = vmatpush2.msra.mxu0 0.0
    %564 = vmatprep.subr.mxu0 0.0
    %565 = vmatpush2.msra.mxu0 0.0
    %566 = vmatprep.subr.mxu0 0.0
    %567 = vmatpush2.msra.mxu0 0.0
    %568 = vmatprep.subr.mxu0 0.0
    %569 = vmatpush2.msra.mxu0 0.0
    %570 = vmatprep.subr.mxu0 0.0
    %571 = vmatpush2.msra.mxu0 0.0
    %572 = vmatprep.subr.mxu0 0.0
    %573 = vmatpush2.msra.mxu0 0.0
    %574 = vmatprep.subr.mxu0 0.0
    %575 = vmatpush2.msra.mxu0 0.0
    %576 = vmatprep.subr.mxu0 0.0
    %577 = vmatpush2.msra.mxu0 0.0
    %578 = vmatprep.subr.mxu0 0.0
    %579 = vmatpush2.msra.mxu0 0.0
    %580 = vmatprep.subr.mxu0 0.0
    %581 = vmatpush2.msra.mxu0 0.0
    %582 = vmatprep.subr.mxu0 0.0
    %583 = vmatpush2.msra.mxu0 0.0
    %584 = vmatprep.mubr.f32.mxu0 0.0
    %585 = vmatmul.mubr.f32.gmra.mxu0 %v518
    %v586 = vpop.f32.mrf.mxu0
    %v587 = vadd.f32 0.0, %v586
    %v588 = vpop.f32.mrf.mxu0
    %589 = vdwg.mxu0
    %v590 = vadd.f32 %v513, %v587
    %v591 = vld [vmem:[%s2] sm:$0x1]
    %v592 = vadd.f32 %v590, %v591
    %v593 = vxor.u32 %v592, 2147483648
    %v594 = vmul.f32 %v593, 1.442695
    %v595 = vpow.pop %v594
    %v596 = vadd.f32 %v595, 1.0
    %v597 = vrcp.pop %v596
    %v598 = vmul.f32 1.0, %v597
    %v599 = vtanh.pop %v592
    %v600 = vmul.f32 %v598, %v380
    %602 = vrot.lane.b32.xlu0 %v599, 32
    %v603 = vpop.permute.xlu0 %602
    %v605 = vmul.f32 %v598, %v603
    %607 = vrot.lane.b32.xlu0 %v605, 32
    %v608 = vpop.permute.xlu0 %607
    %v610 = vadd.f32 %v600, %v608
    %v611 = vtanh.pop %v610
    %613 = vrot.lane.b32.xlu0 %v611, 32
    %v614 = vpop.permute.xlu0 %613
    %v616 = vmul.f32 %v598, %v614
    %v618 = vlaneseq
    %v619 = vshrl.u32 %v618, 7
    %v620 = vsub.s32 0, %v619
    %v621 = vrot.slane %v616, %v620
    %622 = vrot.lane.b32.xlu0 %v621, 64
    %v623 = vpop.permute.xlu0 %622
    %625 = vrot.lane.b32.xlu0 %v504, 96
    %v626 = vpop.permute.xlu0 %625
    %v628 = vsel %vm57, %v623, %v626
    %v629 = vld [vmem:[%s4] sm:$0xff]
    %v630 = vld [vmem:[%s4 + $0x8] sm:$0xff]
    %v631 = vld [vmem:[%s4 + $0x10] sm:$0xff]
    %v632 = vld [vmem:[%s4 + $0x18] sm:$0xff]
    %v633 = vld [vmem:[%s4 + $0x20] sm:$0xff]
    %v634 = vld [vmem:[%s4 + $0x28] sm:$0xff]
    %v635 = vld [vmem:[%s4 + $0x30] sm:$0xff]
    %v636 = vld [vmem:[%s4 + $0x38] sm:$0xff]
    %v637 = vld [vmem:[%s5] sm:$0x1]
    %v639 = vsel %vm176, %v628, 0
    %641 = vmatprep.subr.mxu0 0.0
    %642 = vmatpush1.msra.mxu0 0.0
    %643 = vmatprep.subr.mxu0 0.0
    %644 = vmatpush1.msra.mxu0 0.0
    %645 = vmatprep.subr.mxu0 0.0
    %646 = vmatpush1.msra.mxu0 0.0
    %647 = vmatprep.subr.mxu0 0.0
    %648 = vmatpush1.msra.mxu0 0.0
    %649 = vmatprep.subr.mxu0 0.0
    %650 = vmatpush1.msra.mxu0 0.0
    %651 = vmatprep.subr.mxu0 0.0
    %652 = vmatpush1.msra.mxu0 0.0
    %653 = vmatprep.subr.mxu0 0.0
    %654 = vmatpush1.msra.mxu0 0.0
    %655 = vmatprep.subr.mxu0 0.0
    %656 = vmatpush1.msra.mxu0 0.0
    %657 = vmatprep.subr.mxu0 0.0
    %658 = vmatpush1.msra.mxu0 %v636
    %659 = vmatprep.subr.mxu0 0.0
    %660 = vmatpush1.msra.mxu0 %v635
    %661 = vmatprep.subr.mxu0 0.0
    %662 = vmatpush1.msra.mxu0 %v634
    %663 = vmatprep.subr.mxu0 0.0
    %664 = vmatpush1.msra.mxu0 %v633
    %665 = vmatprep.subr.mxu0 0.0
    %666 = vmatpush1.msra.mxu0 %v632
    %667 = vmatprep.subr.mxu0 0.0
    %668 = vmatpush1.msra.mxu0 %v631
    %669 = vmatprep.subr.mxu0 0.0
    %670 = vmatpush1.msra.mxu0 %v630
    %671 = vmatprep.subr.mxu0 0.0
    %672 = vmatpush1.msra.mxu0 %v629
    %673 = vmatprep.subr.mxu0 0.0
    %674 = vmatpush2.msra.mxu0 0.0
    %675 = vmatprep.subr.mxu0 0.0
    %676 = vmatpush2.msra.mxu0 0.0
    %677 = vmatprep.subr.mxu0 0.0
    %678 = vmatpush2.msra.mxu0 0.0
    %679 = vmatprep.subr.mxu0 0.0
    %680 = vmatpush2.msra.mxu0 0.0
    %681 = vmatprep.subr.mxu0 0.0
    %682 = vmatpush2.msra.mxu0 0.0
    %683 = vmatprep.subr.mxu0 0.0
    %684 = vmatpush2.msra.mxu0 0.0
    %685 = vmatprep.subr.mxu0 0.0
    %686 = vmatpush2.msra.mxu0 0.0
    %687 = vmatprep.subr.mxu0 0.0
    %688 = vmatpush2.msra.mxu0 0.0
    %689 = vmatprep.subr.mxu0 0.0
    %690 = vmatpush2.msra.mxu0 0.0
    %691 = vmatprep.subr.mxu0 0.0
    %692 = vmatpush2.msra.mxu0 0.0
    %693 = vmatprep.subr.mxu0 0.0
    %694 = vmatpush2.msra.mxu0 0.0
    %695 = vmatprep.subr.mxu0 0.0
    %696 = vmatpush2.msra.mxu0 0.0
    %697 = vmatprep.subr.mxu0 0.0
    %698 = vmatpush2.msra.mxu0 0.0
    %699 = vmatprep.subr.mxu0 0.0
    %700 = vmatpush2.msra.mxu0 0.0
    %701 = vmatprep.subr.mxu0 0.0
    %702 = vmatpush2.msra.mxu0 0.0
    %703 = vmatprep.subr.mxu0 0.0
    %704 = vmatpush2.msra.mxu0 0.0
    %705 = vmatprep.mubr.f32.mxu0 0.0
    %706 = vmatmul.mubr.f32.gmra.mxu0 %v639
    %v707 = vpop.f32.mrf.mxu0
    %v708 = vadd.f32 %v637, %v707
    %v709 = vpop.f32.mrf.mxu0
    %710 = vdwg.mxu0
    %v711 = vxor.u32 %v708, 2147483648
    %v712 = vmul.f32 %v711, 1.442695
    %v713 = vpow.pop %v712
    %v714 = vadd.f32 %v713, 1.0
    %v715 = vrcp.pop %v714
    %v716 = vmul.f32 1.0, %v715
    %v717 = vtanh.pop %v708
    %v718 = vmul.f32 %v716, %v498
    %720 = vrot.lane.b32.xlu0 %v717, 32
    %v721 = vpop.permute.xlu0 %720
    %v723 = vmul.f32 %v716, %v721
    %725 = vrot.lane.b32.xlu0 %v723, 32
    %v726 = vpop.permute.xlu0 %725
    %v728 = vadd.f32 %v718, %v726
    %v729 = vtanh.pop %v728
    %731 = vrot.lane.b32.xlu0 %v729, 32
    %v732 = vpop.permute.xlu0 %731
    %v734 = vmul.f32 %v716, %v732
    %736 = vrot.lane.b32.xlu0 %v734, 64
    %v737 = vpop.permute.xlu0 %736
    %739 = vst.msk [vmem:[#allocation2 + $0x2] sm:$0x1] %vm278, %v737
    %s740 = sld [smem:[#allocation4 + $0x3]]
    %v741 = vld [vmem:[%s1] sm:$0x1]
    %v742 = vstv %s740
    %v743 = vmul.f32 %v742, %v741
    %v744 = vld [vmem:[%s3] sm:$0xff]
    %v745 = vld [vmem:[%s3 + $0x8] sm:$0xff]
    %v746 = vld [vmem:[%s3 + $0x10] sm:$0xff]
    %v747 = vld [vmem:[%s3 + $0x18] sm:$0xff]
    %v748 = vsel %vm57, %v623, 0
    %750 = vmatprep.subr.mxu0 0.0
    %751 = vmatpush1.msra.mxu0 0.0
    %752 = vmatprep.subr.mxu0 0.0
    %753 = vmatpush1.msra.mxu0 0.0
    %754 = vmatprep.subr.mxu0 0.0
    %755 = vmatpush1.msra.mxu0 0.0
    %756 = vmatprep.subr.mxu0 0.0
    %757 = vmatpush1.msra.mxu0 0.0
    %758 = vmatprep.subr.mxu0 0.0
    %759 = vmatpush1.msra.mxu0 0.0
    %760 = vmatprep.subr.mxu0 0.0
    %761 = vmatpush1.msra.mxu0 0.0
    %762 = vmatprep.subr.mxu0 0.0
    %763 = vmatpush1.msra.mxu0 0.0
    %764 = vmatprep.subr.mxu0 0.0
    %765 = vmatpush1.msra.mxu0 0.0
    %766 = vmatprep.subr.mxu0 0.0
    %767 = vmatpush1.msra.mxu0 0.0
    %768 = vmatprep.subr.mxu0 0.0
    %769 = vmatpush1.msra.mxu0 0.0
    %770 = vmatprep.subr.mxu0 0.0
    %771 = vmatpush1.msra.mxu0 0.0
    %772 = vmatprep.subr.mxu0 0.0
    %773 = vmatpush1.msra.mxu0 0.0
    %774 = vmatprep.subr.mxu0 0.0
    %775 = vmatpush1.msra.mxu0 %v747
    %776 = vmatprep.subr.mxu0 0.0
    %777 = vmatpush1.msra.mxu0 %v746
    %778 = vmatprep.subr.mxu0 0.0
    %779 = vmatpush1.msra.mxu0 %v745
    %780 = vmatprep.subr.mxu0 0.0
    %781 = vmatpush1.msra.mxu0 %v744
    %782 = vmatprep.subr.mxu0 0.0
    %783 = vmatpush2.msra.mxu0 0.0
    %784 = vmatprep.subr.mxu0 0.0
    %785 = vmatpush2.msra.mxu0 0.0
    %786 = vmatprep.subr.mxu0 0.0
    %787 = vmatpush2.msra.mxu0 0.0
    %788 = vmatprep.subr.mxu0 0.0
    %789 = vmatpush2.msra.mxu0 0.0
    %790 = vmatprep.subr.mxu0 0.0
    %791 = vmatpush2.msra.mxu0 0.0
    %792 = vmatprep.subr.mxu0 0.0
    %793 = vmatpush2.msra.mxu0 0.0
    %794 = vmatprep.subr.mxu0 0.0
    %795 = vmatpush2.msra.mxu0 0.0
    %796 = vmatprep.subr.mxu0 0.0
    %797 = vmatpush2.msra.mxu0 0.0
    %798 = vmatprep.subr.mxu0 0.0
    %799 = vmatpush2.msra.mxu0 0.0
    %800 = vmatprep.subr.mxu0 0.0
    %801 = vmatpush2.msra.mxu0 0.0
    %802 = vmatprep.subr.mxu0 0.0
    %803 = vmatpush2.msra.mxu0 0.0
    %804 = vmatprep.subr.mxu0 0.0
    %805 = vmatpush2.msra.mxu0 0.0
    %806 = vmatprep.subr.mxu0 0.0
    %807 = vmatpush2.msra.mxu0 0.0
    %808 = vmatprep.subr.mxu0 0.0
    %809 = vmatpush2.msra.mxu0 0.0
    %810 = vmatprep.subr.mxu0 0.0
    %811 = vmatpush2.msra.mxu0 0.0
    %812 = vmatprep.subr.mxu0 0.0
    %813 = vmatpush2.msra.mxu0 0.0
    %814 = vmatprep.mubr.f32.mxu0 0.0
    %815 = vmatmul.mubr.f32.gmra.mxu0 %v748
    %v816 = vpop.f32.mrf.mxu0
    %v817 = vadd.f32 0.0, %v816
    %v818 = vpop.f32.mrf.mxu0
    %819 = vdwg.mxu0
    %v820 = vadd.f32 %v743, %v817
    %v821 = vld [vmem:[%s2] sm:$0x1]
    %v822 = vadd.f32 %v820, %v821
    %v823 = vxor.u32 %v822, 2147483648
    %v824 = vmul.f32 %v823, 1.442695
    %v825 = vpow.pop %v824
    %v826 = vadd.f32 %v825, 1.0
    %v827 = vrcp.pop %v826
    %v828 = vmul.f32 1.0, %v827
    %v829 = vtanh.pop %v822
    %v830 = vmul.f32 %v828, %v610
    %832 = vrot.lane.b32.xlu0 %v829, 32
    %v833 = vpop.permute.xlu0 %832
    %v835 = vmul.f32 %v828, %v833
    %837 = vrot.lane.b32.xlu0 %v835, 32
    %v838 = vpop.permute.xlu0 %837
    %v840 = vadd.f32 %v830, %v838
    %v841 = vtanh.pop %v840
    %843 = vrot.lane.b32.xlu0 %v841, 32
    %v844 = vpop.permute.xlu0 %843
    %v846 = vmul.f32 %v828, %v844
    %v848 = vlaneseq
    %v849 = vshrl.u32 %v848, 7
    %v850 = vsub.s32 0, %v849
    %v851 = vrot.slane %v846, %v850
    %852 = vrot.lane.b32.xlu0 %v851, 64
    %v853 = vpop.permute.xlu0 %852
    %855 = vrot.lane.b32.xlu0 %v734, 96
    %v856 = vpop.permute.xlu0 %855
    %v858 = vsel %vm57, %v853, %v856
    %v859 = vld [vmem:[%s4] sm:$0xff]
    %v860 = vld [vmem:[%s4 + $0x8] sm:$0xff]
    %v861 = vld [vmem:[%s4 + $0x10] sm:$0xff]
    %v862 = vld [vmem:[%s4 + $0x18] sm:$0xff]
    %v863 = vld [vmem:[%s4 + $0x20] sm:$0xff]
    %v864 = vld [vmem:[%s4 + $0x28] sm:$0xff]
    %v865 = vld [vmem:[%s4 + $0x30] sm:$0xff]
    %v866 = vld [vmem:[%s4 + $0x38] sm:$0xff]
    %v867 = vld [vmem:[%s5] sm:$0x1]
    %v869 = vsel %vm176, %v858, 0
    %871 = vmatprep.subr.mxu0 0.0
    %872 = vmatpush1.msra.mxu0 0.0
    %873 = vmatprep.subr.mxu0 0.0
    %874 = vmatpush1.msra.mxu0 0.0
    %875 = vmatprep.subr.mxu0 0.0
    %876 = vmatpush1.msra.mxu0 0.0
    %877 = vmatprep.subr.mxu0 0.0
    %878 = vmatpush1.msra.mxu0 0.0
    %879 = vmatprep.subr.mxu0 0.0
    %880 = vmatpush1.msra.mxu0 0.0
    %881 = vmatprep.subr.mxu0 0.0
    %882 = vmatpush1.msra.mxu0 0.0
    %883 = vmatprep.subr.mxu0 0.0
    %884 = vmatpush1.msra.mxu0 0.0
    %885 = vmatprep.subr.mxu0 0.0
    %886 = vmatpush1.msra.mxu0 0.0
    %887 = vmatprep.subr.mxu0 0.0
    %888 = vmatpush1.msra.mxu0 %v866
    %889 = vmatprep.subr.mxu0 0.0
    %890 = vmatpush1.msra.mxu0 %v865
    %891 = vmatprep.subr.mxu0 0.0
    %892 = vmatpush1.msra.mxu0 %v864
    %893 = vmatprep.subr.mxu0 0.0
    %894 = vmatpush1.msra.mxu0 %v863
    %895 = vmatprep.subr.mxu0 0.0
    %896 = vmatpush1.msra.mxu0 %v862
    %897 = vmatprep.subr.mxu0 0.0
    %898 = vmatpush1.msra.mxu0 %v861
    %899 = vmatprep.subr.mxu0 0.0
    %900 = vmatpush1.msra.mxu0 %v860
    %901 = vmatprep.subr.mxu0 0.0
    %902 = vmatpush1.msra.mxu0 %v859
    %903 = vmatprep.subr.mxu0 0.0
    %904 = vmatpush2.msra.mxu0 0.0
    %905 = vmatprep.subr.mxu0 0.0
    %906 = vmatpush2.msra.mxu0 0.0
    %907 = vmatprep.subr.mxu0 0.0
    %908 = vmatpush2.msra.mxu0 0.0
    %909 = vmatprep.subr.mxu0 0.0
    %910 = vmatpush2.msra.mxu0 0.0
    %911 = vmatprep.subr.mxu0 0.0
    %912 = vmatpush2.msra.mxu0 0.0
    %913 = vmatprep.subr.mxu0 0.0
    %914 = vmatpush2.msra.mxu0 0.0
    %915 = vmatprep.subr.mxu0 0.0
    %916 = vmatpush2.msra.mxu0 0.0
    %917 = vmatprep.subr.mxu0 0.0
    %918 = vmatpush2.msra.mxu0 0.0
    %919 = vmatprep.subr.mxu0 0.0
    %920 = vmatpush2.msra.mxu0 0.0
    %921 = vmatprep.subr.mxu0 0.0
    %922 = vmatpush2.msra.mxu0 0.0
    %923 = vmatprep.subr.mxu0 0.0
    %924 = vmatpush2.msra.mxu0 0.0
    %925 = vmatprep.subr.mxu0 0.0
    %926 = vmatpush2.msra.mxu0 0.0
    %927 = vmatprep.subr.mxu0 0.0
    %928 = vmatpush2.msra.mxu0 0.0
    %929 = vmatprep.subr.mxu0 0.0
    %930 = vmatpush2.msra.mxu0 0.0
    %931 = vmatprep.subr.mxu0 0.0
    %932 = vmatpush2.msra.mxu0 0.0
    %933 = vmatprep.subr.mxu0 0.0
    %934 = vmatpush2.msra.mxu0 0.0
    %935 = vmatprep.mubr.f32.mxu0 0.0
    %936 = vmatmul.mubr.f32.gmra.mxu0 %v869
    %v937 = vpop.f32.mrf.mxu0
    %v938 = vadd.f32 %v867, %v937
    %v939 = vpop.f32.mrf.mxu0
    %940 = vdwg.mxu0
    %v941 = vxor.u32 %v938, 2147483648
    %v942 = vmul.f32 %v941, 1.442695
    %v943 = vpow.pop %v942
    %v944 = vadd.f32 %v943, 1.0
    %v945 = vrcp.pop %v944
    %v946 = vmul.f32 1.0, %v945
    %v947 = vtanh.pop %v938
    %v948 = vmul.f32 %v946, %v728
    %950 = vrot.lane.b32.xlu0 %v947, 32
    %v951 = vpop.permute.xlu0 %950
    %v953 = vmul.f32 %v946, %v951
    %955 = vrot.lane.b32.xlu0 %v953, 32
    %v956 = vpop.permute.xlu0 %955
    %v958 = vadd.f32 %v948, %v956
    %v959 = vtanh.pop %v958
    %961 = vrot.lane.b32.xlu0 %v959, 32
    %v962 = vpop.permute.xlu0 %961
    %v964 = vmul.f32 %v946, %v962
    %966 = vrot.lane.b32.xlu0 %v964, 64
    %v967 = vpop.permute.xlu0 %966
    %969 = vst.msk [vmem:[#allocation2 + $0x3] sm:$0x1] %vm278, %v967
    %s970 = sld [smem:[#allocation4 + $0x4]]
    %v971 = vld [vmem:[%s1] sm:$0x1]
    %v972 = vstv %s970
    %v973 = vmul.f32 %v972, %v971
    %v974 = vld [vmem:[%s3] sm:$0xff]
    %v975 = vld [vmem:[%s3 + $0x8] sm:$0xff]
    %v976 = vld [vmem:[%s3 + $0x10] sm:$0xff]
    %v977 = vld [vmem:[%s3 + $0x18] sm:$0xff]
    %v978 = vsel %vm57, %v853, 0
    %980 = vmatprep.subr.mxu0 0.0
    %981 = vmatpush1.msra.mxu0 0.0
    %982 = vmatprep.subr.mxu0 0.0
    %983 = vmatpush1.msra.mxu0 0.0
    %984 = vmatprep.subr.mxu0 0.0
    %985 = vmatpush1.msra.mxu0 0.0
    %986 = vmatprep.subr.mxu0 0.0
    %987 = vmatpush1.msra.mxu0 0.0
    %988 = vmatprep.subr.mxu0 0.0
    %989 = vmatpush1.msra.mxu0 0.0
    %990 = vmatprep.subr.mxu0 0.0
    %991 = vmatpush1.msra.mxu0 0.0
    %992 = vmatprep.subr.mxu0 0.0
    %993 = vmatpush1.msra.mxu0 0.0
    %994 = vmatprep.subr.mxu0 0.0
    %995 = vmatpush1.msra.mxu0 0.0
    %996 = vmatprep.subr.mxu0 0.0
    %997 = vmatpush1.msra.mxu0 0.0
    %998 = vmatprep.subr.mxu0 0.0
    %999 = vmatpush1.msra.mxu0 0.0
    %1000 = vmatprep.subr.mxu0 0.0
    %1001 = vmatpush1.msra.mxu0 0.0
    %1002 = vmatprep.subr.mxu0 0.0
    %1003 = vmatpush1.msra.mxu0 0.0
    %1004 = vmatprep.subr.mxu0 0.0
    %1005 = vmatpush1.msra.mxu0 %v977
    %1006 = vmatprep.subr.mxu0 0.0
    %1007 = vmatpush1.msra.mxu0 %v976
    %1008 = vmatprep.subr.mxu0 0.0
    %1009 = vmatpush1.msra.mxu0 %v975
    %1010 = vmatprep.subr.mxu0 0.0
    %1011 = vmatpush1.msra.mxu0 %v974
    %1012 = vmatprep.subr.mxu0 0.0
    %1013 = vmatpush2.msra.mxu0 0.0
    %1014 = vmatprep.subr.mxu0 0.0
    %1015 = vmatpush2.msra.mxu0 0.0
    %1016 = vmatprep.subr.mxu0 0.0
    %1017 = vmatpush2.msra.mxu0 0.0
    %1018 = vmatprep.subr.mxu0 0.0
    %1019 = vmatpush2.msra.mxu0 0.0
    %1020 = vmatprep.subr.mxu0 0.0
    %1021 = vmatpush2.msra.mxu0 0.0
    %1022 = vmatprep.subr.mxu0 0.0
    %1023 = vmatpush2.msra.mxu0 0.0
    %1024 = vmatprep.subr.mxu0 0.0
    %1025 = vmatpush2.msra.mxu0 0.0
    %1026 = vmatprep.subr.mxu0 0.0
    %1027 = vmatpush2.msra.mxu0 0.0
    %1028 = vmatprep.subr.mxu0 0.0
    %1029 = vmatpush2.msra.mxu0 0.0
    %1030 = vmatprep.subr.mxu0 0.0
    %1031 = vmatpush2.msra.mxu0 0.0
    %1032 = vmatprep.subr.mxu0 0.0
    %1033 = vmatpush2.msra.mxu0 0.0
    %1034 = vmatprep.subr.mxu0 0.0
    %1035 = vmatpush2.msra.mxu0 0.0
    %1036 = vmatprep.subr.mxu0 0.0
    %1037 = vmatpush2.msra.mxu0 0.0
    %1038 = vmatprep.subr.mxu0 0.0
    %1039 = vmatpush2.msra.mxu0 0.0
    %1040 = vmatprep.subr.mxu0 0.0
    %1041 = vmatpush2.msra.mxu0 0.0
    %1042 = vmatprep.subr.mxu0 0.0
    %1043 = vmatpush2.msra.mxu0 0.0
    %1044 = vmatprep.mubr.f32.mxu0 0.0
    %1045 = vmatmul.mubr.f32.gmra.mxu0 %v978
    %v1046 = vpop.f32.mrf.mxu0
    %v1047 = vadd.f32 0.0, %v1046
    %v1048 = vpop.f32.mrf.mxu0
    %1049 = vdwg.mxu0
    %v1050 = vadd.f32 %v973, %v1047
    %v1051 = vld [vmem:[%s2] sm:$0x1]
    %v1052 = vadd.f32 %v1050, %v1051
    %v1053 = vxor.u32 %v1052, 2147483648
    %v1054 = vmul.f32 %v1053, 1.442695
    %v1055 = vpow.pop %v1054
    %v1056 = vadd.f32 %v1055, 1.0
    %v1057 = vrcp.pop %v1056
    %v1058 = vmul.f32 1.0, %v1057
    %v1059 = vtanh.pop %v1052
    %v1060 = vmul.f32 %v1058, %v840
    %1062 = vrot.lane.b32.xlu0 %v1059, 32
    %v1063 = vpop.permute.xlu0 %1062
    %v1065 = vmul.f32 %v1058, %v1063
    %1067 = vrot.lane.b32.xlu0 %v1065, 32
    %v1068 = vpop.permute.xlu0 %1067
    %v1070 = vadd.f32 %v1060, %v1068
    %v1071 = vtanh.pop %v1070
    %1073 = vrot.lane.b32.xlu0 %v1071, 32
    %v1074 = vpop.permute.xlu0 %1073
    %v1076 = vmul.f32 %v1058, %v1074
    %v1078 = vlaneseq
    %v1079 = vshrl.u32 %v1078, 7
    %v1080 = vsub.s32 0, %v1079
    %v1081 = vrot.slane %v1076, %v1080
    %1082 = vrot.lane.b32.xlu0 %v1081, 64
    %v1083 = vpop.permute.xlu0 %1082
    %1085 = vrot.lane.b32.xlu0 %v964, 96
    %v1086 = vpop.permute.xlu0 %1085
    %v1088 = vsel %vm57, %v1083, %v1086
    %v1089 = vld [vmem:[%s4] sm:$0xff]
    %v1090 = vld [vmem:[%s4 + $0x8] sm:$0xff]
    %v1091 = vld [vmem:[%s4 + $0x10] sm:$0xff]
    %v1092 = vld [vmem:[%s4 + $0x18] sm:$0xff]
    %v1093 = vld [vmem:[%s4 + $0x20] sm:$0xff]
    %v1094 = vld [vmem:[%s4 + $0x28] sm:$0xff]
    %v1095 = vld [vmem:[%s4 + $0x30] sm:$0xff]
    %v1096 = vld [vmem:[%s4 + $0x38] sm:$0xff]
    %v1097 = vld [vmem:[%s5] sm:$0x1]
    %v1099 = vsel %vm176, %v1088, 0
    %1101 = vmatprep.subr.mxu0 0.0
    %1102 = vmatpush1.msra.mxu0 0.0
    %1103 = vmatprep.subr.mxu0 0.0
    %1104 = vmatpush1.msra.mxu0 0.0
    %1105 = vmatprep.subr.mxu0 0.0
    %1106 = vmatpush1.msra.mxu0 0.0
    %1107 = vmatprep.subr.mxu0 0.0
    %1108 = vmatpush1.msra.mxu0 0.0
    %1109 = vmatprep.subr.mxu0 0.0
    %1110 = vmatpush1.msra.mxu0 0.0
    %1111 = vmatprep.subr.mxu0 0.0
    %1112 = vmatpush1.msra.mxu0 0.0
    %1113 = vmatprep.subr.mxu0 0.0
    %1114 = vmatpush1.msra.mxu0 0.0
    %1115 = vmatprep.subr.mxu0 0.0
    %1116 = vmatpush1.msra.mxu0 0.0
    %1117 = vmatprep.subr.mxu0 0.0
    %1118 = vmatpush1.msra.mxu0 %v1096
    %1119 = vmatprep.subr.mxu0 0.0
    %1120 = vmatpush1.msra.mxu0 %v1095
    %1121 = vmatprep.subr.mxu0 0.0
    %1122 = vmatpush1.msra.mxu0 %v1094
    %1123 = vmatprep.subr.mxu0 0.0
    %1124 = vmatpush1.msra.mxu0 %v1093
    %1125 = vmatprep.subr.mxu0 0.0
    %1126 = vmatpush1.msra.mxu0 %v1092
    %1127 = vmatprep.subr.mxu0 0.0
    %1128 = vmatpush1.msra.mxu0 %v1091
    %1129 = vmatprep.subr.mxu0 0.0
    %1130 = vmatpush1.msra.mxu0 %v1090
    %1131 = vmatprep.subr.mxu0 0.0
    %1132 = vmatpush1.msra.mxu0 %v1089
    %1133 = vmatprep.subr.mxu0 0.0
    %1134 = vmatpush2.msra.mxu0 0.0
    %1135 = vmatprep.subr.mxu0 0.0
    %1136 = vmatpush2.msra.mxu0 0.0
    %1137 = vmatprep.subr.mxu0 0.0
    %1138 = vmatpush2.msra.mxu0 0.0
    %1139 = vmatprep.subr.mxu0 0.0
    %1140 = vmatpush2.msra.mxu0 0.0
    %1141 = vmatprep.subr.mxu0 0.0
    %1142 = vmatpush2.msra.mxu0 0.0
    %1143 = vmatprep.subr.mxu0 0.0
    %1144 = vmatpush2.msra.mxu0 0.0
    %1145 = vmatprep.subr.mxu0 0.0
    %1146 = vmatpush2.msra.mxu0 0.0
    %1147 = vmatprep.subr.mxu0 0.0
    %1148 = vmatpush2.msra.mxu0 0.0
    %1149 = vmatprep.subr.mxu0 0.0
    %1150 = vmatpush2.msra.mxu0 0.0
    %1151 = vmatprep.subr.mxu0 0.0
    %1152 = vmatpush2.msra.mxu0 0.0
    %1153 = vmatprep.subr.mxu0 0.0
    %1154 = vmatpush2.msra.mxu0 0.0
    %1155 = vmatprep.subr.mxu0 0.0
    %1156 = vmatpush2.msra.mxu0 0.0
    %1157 = vmatprep.subr.mxu0 0.0
    %1158 = vmatpush2.msra.mxu0 0.0
    %1159 = vmatprep.subr.mxu0 0.0
    %1160 = vmatpush2.msra.mxu0 0.0
    %1161 = vmatprep.subr.mxu0 0.0
    %1162 = vmatpush2.msra.mxu0 0.0
    %1163 = vmatprep.subr.mxu0 0.0
    %1164 = vmatpush2.msra.mxu0 0.0
    %1165 = vmatprep.mubr.f32.mxu0 0.0
    %1166 = vmatmul.mubr.f32.gmra.mxu0 %v1099
    %v1167 = vpop.f32.mrf.mxu0
    %v1168 = vadd.f32 %v1097, %v1167
    %v1169 = vpop.f32.mrf.mxu0
    %1170 = vdwg.mxu0
    %v1171 = vxor.u32 %v1168, 2147483648
    %v1172 = vmul.f32 %v1171, 1.442695
    %v1173 = vpow.pop %v1172
    %v1174 = vadd.f32 %v1173, 1.0
    %v1175 = vrcp.pop %v1174
    %v1176 = vmul.f32 1.0, %v1175
    %v1177 = vtanh.pop %v1168
    %v1178 = vmul.f32 %v1176, %v958
    %1180 = vrot.lane.b32.xlu0 %v1177, 32
    %v1181 = vpop.permute.xlu0 %1180
    %v1183 = vmul.f32 %v1176, %v1181
    %1185 = vrot.lane.b32.xlu0 %v1183, 32
    %v1186 = vpop.permute.xlu0 %1185
    %v1188 = vadd.f32 %v1178, %v1186
    %v1189 = vtanh.pop %v1188
    %1191 = vrot.lane.b32.xlu0 %v1189, 32
    %v1192 = vpop.permute.xlu0 %1191
    %v1194 = vmul.f32 %v1176, %v1192
    %1196 = vrot.lane.b32.xlu0 %v1194, 64
    %v1197 = vpop.permute.xlu0 %1196
    %1199 = vst.msk [vmem:[#allocation2 + $0x4] sm:$0x1] %vm278, %v1197
    %s1200 = sld [smem:[#allocation4 + $0x5]]
    %v1201 = vld [vmem:[%s1] sm:$0x1]
    %v1202 = vstv %s1200
    %v1203 = vmul.f32 %v1202, %v1201
    %v1204 = vld [vmem:[%s3] sm:$0xff]
    %v1205 = vld [vmem:[%s3 + $0x8] sm:$0xff]
    %v1206 = vld [vmem:[%s3 + $0x10] sm:$0xff]
    %v1207 = vld [vmem:[%s3 + $0x18] sm:$0xff]
    %v1208 = vsel %vm57, %v1083, 0
    %1210 = vmatprep.subr.mxu0 0.0
    %1211 = vmatpush1.msra.mxu0 0.0
    %1212 = vmatprep.subr.mxu0 0.0
    %1213 = vmatpush1.msra.mxu0 0.0
    %1214 = vmatprep.subr.mxu0 0.0
    %1215 = vmatpush1.msra.mxu0 0.0
    %1216 = vmatprep.subr.mxu0 0.0
    %1217 = vmatpush1.msra.mxu0 0.0
    %1218 = vmatprep.subr.mxu0 0.0
    %1219 = vmatpush1.msra.mxu0 0.0
    %1220 = vmatprep.subr.mxu0 0.0
    %1221 = vmatpush1.msra.mxu0 0.0
    %1222 = vmatprep.subr.mxu0 0.0
    %1223 = vmatpush1.msra.mxu0 0.0
    %1224 = vmatprep.subr.mxu0 0.0
    %1225 = vmatpush1.msra.mxu0 0.0
    %1226 = vmatprep.subr.mxu0 0.0
    %1227 = vmatpush1.msra.mxu0 0.0
    %1228 = vmatprep.subr.mxu0 0.0
    %1229 = vmatpush1.msra.mxu0 0.0
    %1230 = vmatprep.subr.mxu0 0.0
    %1231 = vmatpush1.msra.mxu0 0.0
    %1232 = vmatprep.subr.mxu0 0.0
    %1233 = vmatpush1.msra.mxu0 0.0
    %1234 = vmatprep.subr.mxu0 0.0
    %1235 = vmatpush1.msra.mxu0 %v1207
    %1236 = vmatprep.subr.mxu0 0.0
    %1237 = vmatpush1.msra.mxu0 %v1206
    %1238 = vmatprep.subr.mxu0 0.0
    %1239 = vmatpush1.msra.mxu0 %v1205
    %1240 = vmatprep.subr.mxu0 0.0
    %1241 = vmatpush1.msra.mxu0 %v1204
    %1242 = vmatprep.subr.mxu0 0.0
    %1243 = vmatpush2.msra.mxu0 0.0
    %1244 = vmatprep.subr.mxu0 0.0
    %1245 = vmatpush2.msra.mxu0 0.0
    %1246 = vmatprep.subr.mxu0 0.0
    %1247 = vmatpush2.msra.mxu0 0.0
    %1248 = vmatprep.subr.mxu0 0.0
    %1249 = vmatpush2.msra.mxu0 0.0
    %1250 = vmatprep.subr.mxu0 0.0
    %1251 = vmatpush2.msra.mxu0 0.0
    %1252 = vmatprep.subr.mxu0 0.0
    %1253 = vmatpush2.msra.mxu0 0.0
    %1254 = vmatprep.subr.mxu0 0.0
    %1255 = vmatpush2.msra.mxu0 0.0
    %1256 = vmatprep.subr.mxu0 0.0
    %1257 = vmatpush2.msra.mxu0 0.0
    %1258 = vmatprep.subr.mxu0 0.0
    %1259 = vmatpush2.msra.mxu0 0.0
    %1260 = vmatprep.subr.mxu0 0.0
    %1261 = vmatpush2.msra.mxu0 0.0
    %1262 = vmatprep.subr.mxu0 0.0
    %1263 = vmatpush2.msra.mxu0 0.0
    %1264 = vmatprep.subr.mxu0 0.0
    %1265 = vmatpush2.msra.mxu0 0.0
    %1266 = vmatprep.subr.mxu0 0.0
    %1267 = vmatpush2.msra.mxu0 0.0
    %1268 = vmatprep.subr.mxu0 0.0
    %1269 = vmatpush2.msra.mxu0 0.0
    %1270 = vmatprep.subr.mxu0 0.0
    %1271 = vmatpush2.msra.mxu0 0.0
    %1272 = vmatprep.subr.mxu0 0.0
    %1273 = vmatpush2.msra.mxu0 0.0
    %1274 = vmatprep.mubr.f32.mxu0 0.0
    %1275 = vmatmul.mubr.f32.gmra.mxu0 %v1208
    %v1276 = vpop.f32.mrf.mxu0
    %v1277 = vadd.f32 0.0, %v1276
    %v1278 = vpop.f32.mrf.mxu0
    %1279 = vdwg.mxu0
    %v1280 = vadd.f32 %v1203, %v1277
    %v1281 = vld [vmem:[%s2] sm:$0x1]
    %v1282 = vadd.f32 %v1280, %v1281
    %v1283 = vxor.u32 %v1282, 2147483648
    %v1284 = vmul.f32 %v1283, 1.442695
    %v1285 = vpow.pop %v1284
    %v1286 = vadd.f32 %v1285, 1.0
    %v1287 = vrcp.pop %v1286
    %v1288 = vmul.f32 1.0, %v1287
    %v1289 = vtanh.pop %v1282
    %v1290 = vmul.f32 %v1288, %v1070
    %1292 = vrot.lane.b32.xlu0 %v1289, 32
    %v1293 = vpop.permute.xlu0 %1292
    %v1295 = vmul.f32 %v1288, %v1293
    %1297 = vrot.lane.b32.xlu0 %v1295, 32
    %v1298 = vpop.permute.xlu0 %1297
    %v1300 = vadd.f32 %v1290, %v1298
    %v1301 = vtanh.pop %v1300
    %1303 = vrot.lane.b32.xlu0 %v1301, 32
    %v1304 = vpop.permute.xlu0 %1303
    %v1306 = vmul.f32 %v1288, %v1304
    %v1308 = vlaneseq
    %v1309 = vshrl.u32 %v1308, 7
    %v1310 = vsub.s32 0, %v1309
    %v1311 = vrot.slane %v1306, %v1310
    %1312 = vrot.lane.b32.xlu0 %v1311, 64
    %v1313 = vpop.permute.xlu0 %1312
    %1315 = vrot.lane.b32.xlu0 %v1194, 96
    %v1316 = vpop.permute.xlu0 %1315
    %v1318 = vsel %vm57, %v1313, %v1316
    %v1319 = vld [vmem:[%s4] sm:$0xff]
    %v1320 = vld [vmem:[%s4 + $0x8] sm:$0xff]
    %v1321 = vld [vmem:[%s4 + $0x10] sm:$0xff]
    %v1322 = vld [vmem:[%s4 + $0x18] sm:$0xff]
    %v1323 = vld [vmem:[%s4 + $0x20] sm:$0xff]
    %v1324 = vld [vmem:[%s4 + $0x28] sm:$0xff]
    %v1325 = vld [vmem:[%s4 + $0x30] sm:$0xff]
    %v1326 = vld [vmem:[%s4 + $0x38] sm:$0xff]
    %v1327 = vld [vmem:[%s5] sm:$0x1]
    %v1329 = vsel %vm176, %v1318, 0
    %1331 = vmatprep.subr.mxu0 0.0
    %1332 = vmatpush1.msra.mxu0 0.0
    %1333 = vmatprep.subr.mxu0 0.0
    %1334 = vmatpush1.msra.mxu0 0.0
    %1335 = vmatprep.subr.mxu0 0.0
    %1336 = vmatpush1.msra.mxu0 0.0
    %1337 = vmatprep.subr.mxu0 0.0
    %1338 = vmatpush1.msra.mxu0 0.0
    %1339 = vmatprep.subr.mxu0 0.0
    %1340 = vmatpush1.msra.mxu0 0.0
    %1341 = vmatprep.subr.mxu0 0.0
    %1342 = vmatpush1.msra.mxu0 0.0
    %1343 = vmatprep.subr.mxu0 0.0
    %1344 = vmatpush1.msra.mxu0 0.0
    %1345 = vmatprep.subr.mxu0 0.0
    %1346 = vmatpush1.msra.mxu0 0.0
    %1347 = vmatprep.subr.mxu0 0.0
    %1348 = vmatpush1.msra.mxu0 %v1326
    %1349 = vmatprep.subr.mxu0 0.0
    %1350 = vmatpush1.msra.mxu0 %v1325
    %1351 = vmatprep.subr.mxu0 0.0
    %1352 = vmatpush1.msra.mxu0 %v1324
    %1353 = vmatprep.subr.mxu0 0.0
    %1354 = vmatpush1.msra.mxu0 %v1323
    %1355 = vmatprep.subr.mxu0 0.0
    %1356 = vmatpush1.msra.mxu0 %v1322
    %1357 = vmatprep.subr.mxu0 0.0
    %1358 = vmatpush1.msra.mxu0 %v1321
    %1359 = vmatprep.subr.mxu0 0.0
    %1360 = vmatpush1.msra.mxu0 %v1320
    %1361 = vmatprep.subr.mxu0 0.0
    %1362 = vmatpush1.msra.mxu0 %v1319
    %1363 = vmatprep.subr.mxu0 0.0
    %1364 = vmatpush2.msra.mxu0 0.0
    %1365 = vmatprep.subr.mxu0 0.0
    %1366 = vmatpush2.msra.mxu0 0.0
    %1367 = vmatprep.subr.mxu0 0.0
    %1368 = vmatpush2.msra.mxu0 0.0
    %1369 = vmatprep.subr.mxu0 0.0
    %1370 = vmatpush2.msra.mxu0 0.0
    %1371 = vmatprep.subr.mxu0 0.0
    %1372 = vmatpush2.msra.mxu0 0.0
    %1373 = vmatprep.subr.mxu0 0.0
    %1374 = vmatpush2.msra.mxu0 0.0
    %1375 = vmatprep.subr.mxu0 0.0
    %1376 = vmatpush2.msra.mxu0 0.0
    %1377 = vmatprep.subr.mxu0 0.0
    %1378 = vmatpush2.msra.mxu0 0.0
    %1379 = vmatprep.subr.mxu0 0.0
    %1380 = vmatpush2.msra.mxu0 0.0
    %1381 = vmatprep.subr.mxu0 0.0
    %1382 = vmatpush2.msra.mxu0 0.0
    %1383 = vmatprep.subr.mxu0 0.0
    %1384 = vmatpush2.msra.mxu0 0.0
    %1385 = vmatprep.subr.mxu0 0.0
    %1386 = vmatpush2.msra.mxu0 0.0
    %1387 = vmatprep.subr.mxu0 0.0
    %1388 = vmatpush2.msra.mxu0 0.0
    %1389 = vmatprep.subr.mxu0 0.0
    %1390 = vmatpush2.msra.mxu0 0.0
    %1391 = vmatprep.subr.mxu0 0.0
    %1392 = vmatpush2.msra.mxu0 0.0
    %1393 = vmatprep.subr.mxu0 0.0
    %1394 = vmatpush2.msra.mxu0 0.0
    %1395 = vmatprep.mubr.f32.mxu0 0.0
    %1396 = vmatmul.mubr.f32.gmra.mxu0 %v1329
    %v1397 = vpop.f32.mrf.mxu0
    %v1398 = vadd.f32 %v1327, %v1397
    %v1399 = vpop.f32.mrf.mxu0
    %1400 = vdwg.mxu0
    %v1401 = vxor.u32 %v1398, 2147483648
    %v1402 = vmul.f32 %v1401, 1.442695
    %v1403 = vpow.pop %v1402
    %v1404 = vadd.f32 %v1403, 1.0
    %v1405 = vrcp.pop %v1404
    %v1406 = vmul.f32 1.0, %v1405
    %v1407 = vtanh.pop %v1398
    %v1408 = vmul.f32 %v1406, %v1188
    %1410 = vrot.lane.b32.xlu0 %v1407, 32
    %v1411 = vpop.permute.xlu0 %1410
    %v1413 = vmul.f32 %v1406, %v1411
    %1415 = vrot.lane.b32.xlu0 %v1413, 32
    %v1416 = vpop.permute.xlu0 %1415
    %v1418 = vadd.f32 %v1408, %v1416
    %v1419 = vtanh.pop %v1418
    %1421 = vrot.lane.b32.xlu0 %v1419, 32
    %v1422 = vpop.permute.xlu0 %1421
    %v1424 = vmul.f32 %v1406, %v1422
    %1426 = vrot.lane.b32.xlu0 %v1424, 64
    %v1427 = vpop.permute.xlu0 %1426
    %1429 = vst.msk [vmem:[#allocation2 + $0x5] sm:$0x1] %vm278, %v1427
    %s1430 = sld [smem:[#allocation4 + $0x6]]
    %v1431 = vld [vmem:[%s1] sm:$0x1]
    %v1432 = vstv %s1430
    %v1433 = vmul.f32 %v1432, %v1431
    %v1434 = vld [vmem:[%s3] sm:$0xff]
    %v1435 = vld [vmem:[%s3 + $0x8] sm:$0xff]
    %v1436 = vld [vmem:[%s3 + $0x10] sm:$0xff]
    %v1437 = vld [vmem:[%s3 + $0x18] sm:$0xff]
    %v1438 = vsel %vm57, %v1313, 0
    %1440 = vmatprep.subr.mxu0 0.0
    %1441 = vmatpush1.msra.mxu0 0.0
    %1442 = vmatprep.subr.mxu0 0.0
    %1443 = vmatpush1.msra.mxu0 0.0
    %1444 = vmatprep.subr.mxu0 0.0
    %1445 = vmatpush1.msra.mxu0 0.0
    %1446 = vmatprep.subr.mxu0 0.0
    %1447 = vmatpush1.msra.mxu0 0.0
    %1448 = vmatprep.subr.mxu0 0.0
    %1449 = vmatpush1.msra.mxu0 0.0
    %1450 = vmatprep.subr.mxu0 0.0
    %1451 = vmatpush1.msra.mxu0 0.0
    %1452 = vmatprep.subr.mxu0 0.0
    %1453 = vmatpush1.msra.mxu0 0.0
    %1454 = vmatprep.subr.mxu0 0.0
    %1455 = vmatpush1.msra.mxu0 0.0
    %1456 = vmatprep.subr.mxu0 0.0
    %1457 = vmatpush1.msra.mxu0 0.0
    %1458 = vmatprep.subr.mxu0 0.0
    %1459 = vmatpush1.msra.mxu0 0.0
    %1460 = vmatprep.subr.mxu0 0.0
    %1461 = vmatpush1.msra.mxu0 0.0
    %1462 = vmatprep.subr.mxu0 0.0
    %1463 = vmatpush1.msra.mxu0 0.0
    %1464 = vmatprep.subr.mxu0 0.0
    %1465 = vmatpush1.msra.mxu0 %v1437
    %1466 = vmatprep.subr.mxu0 0.0
    %1467 = vmatpush1.msra.mxu0 %v1436
    %1468 = vmatprep.subr.mxu0 0.0
    %1469 = vmatpush1.msra.mxu0 %v1435
    %1470 = vmatprep.subr.mxu0 0.0
    %1471 = vmatpush1.msra.mxu0 %v1434
    %1472 = vmatprep.subr.mxu0 0.0
    %1473 = vmatpush2.msra.mxu0 0.0
    %1474 = vmatprep.subr.mxu0 0.0
    %1475 = vmatpush2.msra.mxu0 0.0
    %1476 = vmatprep.subr.mxu0 0.0
    %1477 = vmatpush2.msra.mxu0 0.0
    %1478 = vmatprep.subr.mxu0 0.0
    %1479 = vmatpush2.msra.mxu0 0.0
    %1480 = vmatprep.subr.mxu0 0.0
    %1481 = vmatpush2.msra.mxu0 0.0
    %1482 = vmatprep.subr.mxu0 0.0
    %1483 = vmatpush2.msra.mxu0 0.0
    %1484 = vmatprep.subr.mxu0 0.0
    %1485 = vmatpush2.msra.mxu0 0.0
    %1486 = vmatprep.subr.mxu0 0.0
    %1487 = vmatpush2.msra.mxu0 0.0
    %1488 = vmatprep.subr.mxu0 0.0
    %1489 = vmatpush2.msra.mxu0 0.0
    %1490 = vmatprep.subr.mxu0 0.0
    %1491 = vmatpush2.msra.mxu0 0.0
    %1492 = vmatprep.subr.mxu0 0.0
    %1493 = vmatpush2.msra.mxu0 0.0
    %1494 = vmatprep.subr.mxu0 0.0
    %1495 = vmatpush2.msra.mxu0 0.0
    %1496 = vmatprep.subr.mxu0 0.0
    %1497 = vmatpush2.msra.mxu0 0.0
    %1498 = vmatprep.subr.mxu0 0.0
    %1499 = vmatpush2.msra.mxu0 0.0
    %1500 = vmatprep.subr.mxu0 0.0
    %1501 = vmatpush2.msra.mxu0 0.0
    %1502 = vmatprep.subr.mxu0 0.0
    %1503 = vmatpush2.msra.mxu0 0.0
    %1504 = vmatprep.mubr.f32.mxu0 0.0
    %1505 = vmatmul.mubr.f32.gmra.mxu0 %v1438
    %v1506 = vpop.f32.mrf.mxu0
    %v1507 = vadd.f32 0.0, %v1506
    %v1508 = vpop.f32.mrf.mxu0
    %1509 = vdwg.mxu0
    %v1510 = vadd.f32 %v1433, %v1507
    %v1511 = vld [vmem:[%s2] sm:$0x1]
    %v1512 = vadd.f32 %v1510, %v1511
    %v1513 = vxor.u32 %v1512, 2147483648
    %v1514 = vmul.f32 %v1513, 1.442695
    %v1515 = vpow.pop %v1514
    %v1516 = vadd.f32 %v1515, 1.0
    %v1517 = vrcp.pop %v1516
    %v1518 = vmul.f32 1.0, %v1517
    %v1519 = vtanh.pop %v1512
    %v1520 = vmul.f32 %v1518, %v1300
    %1522 = vrot.lane.b32.xlu0 %v1519, 32
    %v1523 = vpop.permute.xlu0 %1522
    %v1525 = vmul.f32 %v1518, %v1523
    %1527 = vrot.lane.b32.xlu0 %v1525, 32
    %v1528 = vpop.permute.xlu0 %1527
    %v1530 = vadd.f32 %v1520, %v1528
    %v1531 = vtanh.pop %v1530
    %1533 = vrot.lane.b32.xlu0 %v1531, 32
    %v1534 = vpop.permute.xlu0 %1533
    %v1536 = vmul.f32 %v1518, %v1534
    %v1538 = vlaneseq
    %v1539 = vshrl.u32 %v1538, 7
    %v1540 = vsub.s32 0, %v1539
    %v1541 = vrot.slane %v1536, %v1540
    %1542 = vrot.lane.b32.xlu0 %v1541, 64
    %v1543 = vpop.permute.xlu0 %1542
    %1545 = vrot.lane.b32.xlu0 %v1424, 96
    %v1546 = vpop.permute.xlu0 %1545
    %v1548 = vsel %vm57, %v1543, %v1546
    %v1549 = vld [vmem:[%s4] sm:$0xff]
    %v1550 = vld [vmem:[%s4 + $0x8] sm:$0xff]
    %v1551 = vld [vmem:[%s4 + $0x10] sm:$0xff]
    %v1552 = vld [vmem:[%s4 + $0x18] sm:$0xff]
    %v1553 = vld [vmem:[%s4 + $0x20] sm:$0xff]
    %v1554 = vld [vmem:[%s4 + $0x28] sm:$0xff]
    %v1555 = vld [vmem:[%s4 + $0x30] sm:$0xff]
    %v1556 = vld [vmem:[%s4 + $0x38] sm:$0xff]
    %v1557 = vld [vmem:[%s5] sm:$0x1]
    %v1559 = vsel %vm176, %v1548, 0
    %1561 = vmatprep.subr.mxu0 0.0
    %1562 = vmatpush1.msra.mxu0 0.0
    %1563 = vmatprep.subr.mxu0 0.0
    %1564 = vmatpush1.msra.mxu0 0.0
    %1565 = vmatprep.subr.mxu0 0.0
    %1566 = vmatpush1.msra.mxu0 0.0
    %1567 = vmatprep.subr.mxu0 0.0
    %1568 = vmatpush1.msra.mxu0 0.0
    %1569 = vmatprep.subr.mxu0 0.0
    %1570 = vmatpush1.msra.mxu0 0.0
    %1571 = vmatprep.subr.mxu0 0.0
    %1572 = vmatpush1.msra.mxu0 0.0
    %1573 = vmatprep.subr.mxu0 0.0
    %1574 = vmatpush1.msra.mxu0 0.0
    %1575 = vmatprep.subr.mxu0 0.0
    %1576 = vmatpush1.msra.mxu0 0.0
    %1577 = vmatprep.subr.mxu0 0.0
    %1578 = vmatpush1.msra.mxu0 %v1556
    %1579 = vmatprep.subr.mxu0 0.0
    %1580 = vmatpush1.msra.mxu0 %v1555
    %1581 = vmatprep.subr.mxu0 0.0
    %1582 = vmatpush1.msra.mxu0 %v1554
    %1583 = vmatprep.subr.mxu0 0.0
    %1584 = vmatpush1.msra.mxu0 %v1553
    %1585 = vmatprep.subr.mxu0 0.0
    %1586 = vmatpush1.msra.mxu0 %v1552
    %1587 = vmatprep.subr.mxu0 0.0
    %1588 = vmatpush1.msra.mxu0 %v1551
    %1589 = vmatprep.subr.mxu0 0.0
    %1590 = vmatpush1.msra.mxu0 %v1550
    %1591 = vmatprep.subr.mxu0 0.0
    %1592 = vmatpush1.msra.mxu0 %v1549
    %1593 = vmatprep.subr.mxu0 0.0
    %1594 = vmatpush2.msra.mxu0 0.0
    %1595 = vmatprep.subr.mxu0 0.0
    %1596 = vmatpush2.msra.mxu0 0.0
    %1597 = vmatprep.subr.mxu0 0.0
    %1598 = vmatpush2.msra.mxu0 0.0
    %1599 = vmatprep.subr.mxu0 0.0
    %1600 = vmatpush2.msra.mxu0 0.0
    %1601 = vmatprep.subr.mxu0 0.0
    %1602 = vmatpush2.msra.mxu0 0.0
    %1603 = vmatprep.subr.mxu0 0.0
    %1604 = vmatpush2.msra.mxu0 0.0
    %1605 = vmatprep.subr.mxu0 0.0
    %1606 = vmatpush2.msra.mxu0 0.0
    %1607 = vmatprep.subr.mxu0 0.0
    %1608 = vmatpush2.msra.mxu0 0.0
    %1609 = vmatprep.subr.mxu0 0.0
    %1610 = vmatpush2.msra.mxu0 0.0
    %1611 = vmatprep.subr.mxu0 0.0
    %1612 = vmatpush2.msra.mxu0 0.0
    %1613 = vmatprep.subr.mxu0 0.0
    %1614 = vmatpush2.msra.mxu0 0.0
    %1615 = vmatprep.subr.mxu0 0.0
    %1616 = vmatpush2.msra.mxu0 0.0
    %1617 = vmatprep.subr.mxu0 0.0
    %1618 = vmatpush2.msra.mxu0 0.0
    %1619 = vmatprep.subr.mxu0 0.0
    %1620 = vmatpush2.msra.mxu0 0.0
    %1621 = vmatprep.subr.mxu0 0.0
    %1622 = vmatpush2.msra.mxu0 0.0
    %1623 = vmatprep.subr.mxu0 0.0
    %1624 = vmatpush2.msra.mxu0 0.0
    %1625 = vmatprep.mubr.f32.mxu0 0.0
    %1626 = vmatmul.mubr.f32.gmra.mxu0 %v1559
    %v1627 = vpop.f32.mrf.mxu0
    %v1628 = vadd.f32 %v1557, %v1627
    %v1629 = vpop.f32.mrf.mxu0
    %1630 = vdwg.mxu0
    %v1631 = vxor.u32 %v1628, 2147483648
    %v1632 = vmul.f32 %v1631, 1.442695
    %v1633 = vpow.pop %v1632
    %v1634 = vadd.f32 %v1633, 1.0
    %v1635 = vrcp.pop %v1634
    %v1636 = vmul.f32 1.0, %v1635
    %v1637 = vtanh.pop %v1628
    %v1638 = vmul.f32 %v1636, %v1418
    %1640 = vrot.lane.b32.xlu0 %v1637, 32
    %v1641 = vpop.permute.xlu0 %1640
    %v1643 = vmul.f32 %v1636, %v1641
    %1645 = vrot.lane.b32.xlu0 %v1643, 32
    %v1646 = vpop.permute.xlu0 %1645
    %v1648 = vadd.f32 %v1638, %v1646
    %v1649 = vtanh.pop %v1648
    %1651 = vrot.lane.b32.xlu0 %v1649, 32
    %v1652 = vpop.permute.xlu0 %1651
    %v1654 = vmul.f32 %v1636, %v1652
    %1656 = vrot.lane.b32.xlu0 %v1654, 64
    %v1657 = vpop.permute.xlu0 %1656
    %1659 = vst.msk [vmem:[#allocation2 + $0x6] sm:$0x1] %vm278, %v1657
    %s1660 = sld [smem:[#allocation4 + $0x7]]
    %v1661 = vld [vmem:[%s1] sm:$0x1]
    %v1662 = vstv %s1660
    %v1663 = vmul.f32 %v1662, %v1661
    %v1664 = vld [vmem:[%s3] sm:$0xff]
    %v1665 = vld [vmem:[%s3 + $0x8] sm:$0xff]
    %v1666 = vld [vmem:[%s3 + $0x10] sm:$0xff]
    %v1667 = vld [vmem:[%s3 + $0x18] sm:$0xff]
    %v1668 = vsel %vm57, %v1543, 0
    %1670 = vmatprep.subr.mxu0 0.0
    %1671 = vmatpush1.msra.mxu0 0.0
    %1672 = vmatprep.subr.mxu0 0.0
    %1673 = vmatpush1.msra.mxu0 0.0
    %1674 = vmatprep.subr.mxu0 0.0
    %1675 = vmatpush1.msra.mxu0 0.0
    %1676 = vmatprep.subr.mxu0 0.0
    %1677 = vmatpush1.msra.mxu0 0.0
    %1678 = vmatprep.subr.mxu0 0.0
    %1679 = vmatpush1.msra.mxu0 0.0
    %1680 = vmatprep.subr.mxu0 0.0
    %1681 = vmatpush1.msra.mxu0 0.0
    %1682 = vmatprep.subr.mxu0 0.0
    %1683 = vmatpush1.msra.mxu0 0.0
    %1684 = vmatprep.subr.mxu0 0.0
    %1685 = vmatpush1.msra.mxu0 0.0
    %1686 = vmatprep.subr.mxu0 0.0
    %1687 = vmatpush1.msra.mxu0 0.0
    %1688 = vmatprep.subr.mxu0 0.0
    %1689 = vmatpush1.msra.mxu0 0.0
    %1690 = vmatprep.subr.mxu0 0.0
    %1691 = vmatpush1.msra.mxu0 0.0
    %1692 = vmatprep.subr.mxu0 0.0
    %1693 = vmatpush1.msra.mxu0 0.0
    %1694 = vmatprep.subr.mxu0 0.0
    %1695 = vmatpush1.msra.mxu0 %v1667
    %1696 = vmatprep.subr.mxu0 0.0
    %1697 = vmatpush1.msra.mxu0 %v1666
    %1698 = vmatprep.subr.mxu0 0.0
    %1699 = vmatpush1.msra.mxu0 %v1665
    %1700 = vmatprep.subr.mxu0 0.0
    %1701 = vmatpush1.msra.mxu0 %v1664
    %1702 = vmatprep.subr.mxu0 0.0
    %1703 = vmatpush2.msra.mxu0 0.0
    %1704 = vmatprep.subr.mxu0 0.0
    %1705 = vmatpush2.msra.mxu0 0.0
    %1706 = vmatprep.subr.mxu0 0.0
    %1707 = vmatpush2.msra.mxu0 0.0
    %1708 = vmatprep.subr.mxu0 0.0
    %1709 = vmatpush2.msra.mxu0 0.0
    %1710 = vmatprep.subr.mxu0 0.0
    %1711 = vmatpush2.msra.mxu0 0.0
    %1712 = vmatprep.subr.mxu0 0.0
    %1713 = vmatpush2.msra.mxu0 0.0
    %1714 = vmatprep.subr.mxu0 0.0
    %1715 = vmatpush2.msra.mxu0 0.0
    %1716 = vmatprep.subr.mxu0 0.0
    %1717 = vmatpush2.msra.mxu0 0.0
    %1718 = vmatprep.subr.mxu0 0.0
    %1719 = vmatpush2.msra.mxu0 0.0
    %1720 = vmatprep.subr.mxu0 0.0
    %1721 = vmatpush2.msra.mxu0 0.0
    %1722 = vmatprep.subr.mxu0 0.0
    %1723 = vmatpush2.msra.mxu0 0.0
    %1724 = vmatprep.subr.mxu0 0.0
    %1725 = vmatpush2.msra.mxu0 0.0
    %1726 = vmatprep.subr.mxu0 0.0
    %1727 = vmatpush2.msra.mxu0 0.0
    %1728 = vmatprep.subr.mxu0 0.0
    %1729 = vmatpush2.msra.mxu0 0.0
    %1730 = vmatprep.subr.mxu0 0.0
    %1731 = vmatpush2.msra.mxu0 0.0
    %1732 = vmatprep.subr.mxu0 0.0
    %1733 = vmatpush2.msra.mxu0 0.0
    %1734 = vmatprep.mubr.f32.mxu0 0.0
    %1735 = vmatmul.mubr.f32.gmra.mxu0 %v1668
    %v1736 = vpop.f32.mrf.mxu0
    %v1737 = vadd.f32 0.0, %v1736
    %v1738 = vpop.f32.mrf.mxu0
    %1739 = vdwg.mxu0
    %v1740 = vadd.f32 %v1663, %v1737
    %v1741 = vld [vmem:[%s2] sm:$0x1]
    %v1742 = vadd.f32 %v1740, %v1741
    %v1743 = vxor.u32 %v1742, 2147483648
    %v1744 = vmul.f32 %v1743, 1.442695
    %v1745 = vpow.pop %v1744
    %v1746 = vadd.f32 %v1745, 1.0
    %v1747 = vrcp.pop %v1746
    %v1748 = vmul.f32 1.0, %v1747
    %v1749 = vtanh.pop %v1742
    %v1750 = vmul.f32 %v1748, %v1530
    %1752 = vrot.lane.b32.xlu0 %v1749, 32
    %v1753 = vpop.permute.xlu0 %1752
    %v1755 = vmul.f32 %v1748, %v1753
    %1757 = vrot.lane.b32.xlu0 %v1755, 32
    %v1758 = vpop.permute.xlu0 %1757
    %v1760 = vadd.f32 %v1750, %v1758
    %v1761 = vtanh.pop %v1760
    %1763 = vrot.lane.b32.xlu0 %v1761, 32
    %v1764 = vpop.permute.xlu0 %1763
    %v1766 = vmul.f32 %v1748, %v1764
    %v1768 = vlaneseq
    %v1769 = vshrl.u32 %v1768, 7
    %v1770 = vsub.s32 0, %v1769
    %v1771 = vrot.slane %v1766, %v1770
    %1772 = vrot.lane.b32.xlu0 %v1771, 64
    %v1773 = vpop.permute.xlu0 %1772
    %1775 = vrot.lane.b32.xlu0 %v1654, 96
    %v1776 = vpop.permute.xlu0 %1775
    %v1778 = vsel %vm57, %v1773, %v1776
    %v1779 = vld [vmem:[%s4] sm:$0xff]
    %v1780 = vld [vmem:[%s4 + $0x8] sm:$0xff]
    %v1781 = vld [vmem:[%s4 + $0x10] sm:$0xff]
    %v1782 = vld [vmem:[%s4 + $0x18] sm:$0xff]
    %v1783 = vld [vmem:[%s4 + $0x20] sm:$0xff]
    %v1784 = vld [vmem:[%s4 + $0x28] sm:$0xff]
    %v1785 = vld [vmem:[%s4 + $0x30] sm:$0xff]
    %v1786 = vld [vmem:[%s4 + $0x38] sm:$0xff]
    %v1787 = vld [vmem:[%s5] sm:$0x1]
    %v1789 = vsel %vm176, %v1778, 0
    %1791 = vmatprep.subr.mxu0 0.0
    %1792 = vmatpush1.msra.mxu0 0.0
    %1793 = vmatprep.subr.mxu0 0.0
    %1794 = vmatpush1.msra.mxu0 0.0
    %1795 = vmatprep.subr.mxu0 0.0
    %1796 = vmatpush1.msra.mxu0 0.0
    %1797 = vmatprep.subr.mxu0 0.0
    %1798 = vmatpush1.msra.mxu0 0.0
    %1799 = vmatprep.subr.mxu0 0.0
    %1800 = vmatpush1.msra.mxu0 0.0
    %1801 = vmatprep.subr.mxu0 0.0
    %1802 = vmatpush1.msra.mxu0 0.0
    %1803 = vmatprep.subr.mxu0 0.0
    %1804 = vmatpush1.msra.mxu0 0.0
    %1805 = vmatprep.subr.mxu0 0.0
    %1806 = vmatpush1.msra.mxu0 0.0
    %1807 = vmatprep.subr.mxu0 0.0
    %1808 = vmatpush1.msra.mxu0 %v1786
    %1809 = vmatprep.subr.mxu0 0.0
    %1810 = vmatpush1.msra.mxu0 %v1785
    %1811 = vmatprep.subr.mxu0 0.0
    %1812 = vmatpush1.msra.mxu0 %v1784
    %1813 = vmatprep.subr.mxu0 0.0
    %1814 = vmatpush1.msra.mxu0 %v1783
    %1815 = vmatprep.subr.mxu0 0.0
    %1816 = vmatpush1.msra.mxu0 %v1782
    %1817 = vmatprep.subr.mxu0 0.0
    %1818 = vmatpush1.msra.mxu0 %v1781
    %1819 = vmatprep.subr.mxu0 0.0
    %1820 = vmatpush1.msra.mxu0 %v1780
    %1821 = vmatprep.subr.mxu0 0.0
    %1822 = vmatpush1.msra.mxu0 %v1779
    %1823 = vmatprep.subr.mxu0 0.0
    %1824 = vmatpush2.msra.mxu0 0.0
    %1825 = vmatprep.subr.mxu0 0.0
    %1826 = vmatpush2.msra.mxu0 0.0
    %1827 = vmatprep.subr.mxu0 0.0
    %1828 = vmatpush2.msra.mxu0 0.0
    %1829 = vmatprep.subr.mxu0 0.0
    %1830 = vmatpush2.msra.mxu0 0.0
    %1831 = vmatprep.subr.mxu0 0.0
    %1832 = vmatpush2.msra.mxu0 0.0
    %1833 = vmatprep.subr.mxu0 0.0
    %1834 = vmatpush2.msra.mxu0 0.0
    %1835 = vmatprep.subr.mxu0 0.0
    %1836 = vmatpush2.msra.mxu0 0.0
    %1837 = vmatprep.subr.mxu0 0.0
    %1838 = vmatpush2.msra.mxu0 0.0
    %1839 = vmatprep.subr.mxu0 0.0
    %1840 = vmatpush2.msra.mxu0 0.0
    %1841 = vmatprep.subr.mxu0 0.0
    %1842 = vmatpush2.msra.mxu0 0.0
    %1843 = vmatprep.subr.mxu0 0.0
    %1844 = vmatpush2.msra.mxu0 0.0
    %1845 = vmatprep.subr.mxu0 0.0
    %1846 = vmatpush2.msra.mxu0 0.0
    %1847 = vmatprep.subr.mxu0 0.0
    %1848 = vmatpush2.msra.mxu0 0.0
    %1849 = vmatprep.subr.mxu0 0.0
    %1850 = vmatpush2.msra.mxu0 0.0
    %1851 = vmatprep.subr.mxu0 0.0
    %1852 = vmatpush2.msra.mxu0 0.0
    %1853 = vmatprep.subr.mxu0 0.0
    %1854 = vmatpush2.msra.mxu0 0.0
    %1855 = vmatprep.mubr.f32.mxu0 0.0
    %1856 = vmatmul.mubr.f32.gmra.mxu0 %v1789
    %v1857 = vpop.f32.mrf.mxu0
    %v1858 = vadd.f32 %v1787, %v1857
    %v1859 = vpop.f32.mrf.mxu0
    %1860 = vdwg.mxu0
    %v1861 = vxor.u32 %v1858, 2147483648
    %v1862 = vmul.f32 %v1861, 1.442695
    %v1863 = vpow.pop %v1862
    %v1864 = vadd.f32 %v1863, 1.0
    %v1865 = vrcp.pop %v1864
    %v1866 = vmul.f32 1.0, %v1865
    %v1867 = vtanh.pop %v1858
    %v1868 = vmul.f32 %v1866, %v1648
    %1870 = vrot.lane.b32.xlu0 %v1867, 32
    %v1871 = vpop.permute.xlu0 %1870
    %v1873 = vmul.f32 %v1866, %v1871
    %1875 = vrot.lane.b32.xlu0 %v1873, 32
    %v1876 = vpop.permute.xlu0 %1875
    %v1878 = vadd.f32 %v1868, %v1876
    %v1879 = vtanh.pop %v1878
    %1881 = vrot.lane.b32.xlu0 %v1879, 32
    %v1882 = vpop.permute.xlu0 %1881
    %v1884 = vmul.f32 %v1866, %v1882
    %1886 = vrot.lane.b32.xlu0 %v1884, 64
    %v1887 = vpop.permute.xlu0 %1886
    %1889 = vst.msk [vmem:[#allocation2 + $0x7] sm:$0x1] %vm278, %v1887
    %v1890 = vld [vmem:[#allocation2] sm:$0xff]
    %v1891 = vld [vmem:[%s6] sm:$0xff]
    %v1892 = vld [vmem:[%s6 + $0x8] sm:$0xff]
    %v1893 = vld [vmem:[%s6 + $0x10] sm:$0xff]
    %v1894 = vld [vmem:[%s6 + $0x18] sm:$0xff]
    %v1895 = vld [vmem:[#allocation3] sm:$0x1]
    %v1897 = vlaneseq
    %v1898 = vshrl.u32 %v1897, 7
    %v1899 = vsub.s32 0, %v1898
    %v1900 = vrot.slane %v1895, %v1899
    %v1903 = vsel %vm57, %v1890, 0
    %1905 = vmatprep.subr.mxu0 0.0
    %1906 = vmatpush1.msra.mxu0 0.0
    %1907 = vmatprep.subr.mxu0 0.0
    %1908 = vmatpush1.msra.mxu0 0.0
    %1909 = vmatprep.subr.mxu0 0.0
    %1910 = vmatpush1.msra.mxu0 0.0
    %1911 = vmatprep.subr.mxu0 0.0
    %1912 = vmatpush1.msra.mxu0 0.0
    %1913 = vmatprep.subr.mxu0 0.0
    %1914 = vmatpush1.msra.mxu0 0.0
    %1915 = vmatprep.subr.mxu0 0.0
    %1916 = vmatpush1.msra.mxu0 0.0
    %1917 = vmatprep.subr.mxu0 0.0
    %1918 = vmatpush1.msra.mxu0 0.0
    %1919 = vmatprep.subr.mxu0 0.0
    %1920 = vmatpush1.msra.mxu0 0.0
    %1921 = vmatprep.subr.mxu0 0.0
    %1922 = vmatpush1.msra.mxu0 0.0
    %1923 = vmatprep.subr.mxu0 0.0
    %1924 = vmatpush1.msra.mxu0 0.0
    %1925 = vmatprep.subr.mxu0 0.0
    %1926 = vmatpush1.msra.mxu0 0.0
    %1927 = vmatprep.subr.mxu0 0.0
    %1928 = vmatpush1.msra.mxu0 0.0
    %1929 = vmatprep.subr.mxu0 0.0
    %1930 = vmatpush1.msra.mxu0 %v1894
    %1931 = vmatprep.subr.mxu0 0.0
    %1932 = vmatpush1.msra.mxu0 %v1893
    %1933 = vmatprep.subr.mxu0 0.0
    %1934 = vmatpush1.msra.mxu0 %v1892
    %1935 = vmatprep.subr.mxu0 0.0
    %1936 = vmatpush1.msra.mxu0 %v1891
    %1937 = vmatprep.subr.mxu0 0.0
    %1938 = vmatpush2.msra.mxu0 0.0
    %1939 = vmatprep.subr.mxu0 0.0
    %1940 = vmatpush2.msra.mxu0 0.0
    %1941 = vmatprep.subr.mxu0 0.0
    %1942 = vmatpush2.msra.mxu0 0.0
    %1943 = vmatprep.subr.mxu0 0.0
    %1944 = vmatpush2.msra.mxu0 0.0
    %1945 = vmatprep.subr.mxu0 0.0
    %1946 = vmatpush2.msra.mxu0 0.0
    %1947 = vmatprep.subr.mxu0 0.0
    %1948 = vmatpush2.msra.mxu0 0.0
    %1949 = vmatprep.subr.mxu0 0.0
    %1950 = vmatpush2.msra.mxu0 0.0
    %1951 = vmatprep.subr.mxu0 0.0
    %1952 = vmatpush2.msra.mxu0 0.0
    %1953 = vmatprep.subr.mxu0 0.0
    %1954 = vmatpush2.msra.mxu0 0.0
    %1955 = vmatprep.subr.mxu0 0.0
    %1956 = vmatpush2.msra.mxu0 0.0
    %1957 = vmatprep.subr.mxu0 0.0
    %1958 = vmatpush2.msra.mxu0 0.0
    %1959 = vmatprep.subr.mxu0 0.0
    %1960 = vmatpush2.msra.mxu0 0.0
    %1961 = vmatprep.subr.mxu0 0.0
    %1962 = vmatpush2.msra.mxu0 0.0
    %1963 = vmatprep.subr.mxu0 0.0
    %1964 = vmatpush2.msra.mxu0 0.0
    %1965 = vmatprep.subr.mxu0 0.0
    %1966 = vmatpush2.msra.mxu0 0.0
    %1967 = vmatprep.subr.mxu0 0.0
    %1968 = vmatpush2.msra.mxu0 0.0
    %1969 = vmatprep.mubr.f32.mxu0 0.0
    %1970 = vmatmul.mubr.f32.gmra.mxu0 %v1903
    %v1971 = vpop.f32.mrf.mxu0
    %v1972 = vadd.f32 %v1900, %v1971
    %v1973 = vpop.f32.mrf.mxu0
    %1974 = vdwg.mxu0
    %vm1975 = vcmask 7168
    %1976 = vst.msk [vmem:[%s8] sm:$0xff] %vm1975, %v1972
    %1977 = vst.msk [vmem:[#allocation7] sm:$0x1] %vm278, %v1773
    %1978 = vst.msk [vmem:[#allocation7 + $0x1] sm:$0x1] %vm278, %v1887
    %v1980 = vlaneseq
    %v1981 = vshrl.u32 %v1980, 7
    %v1982 = vsub.s32 0, %v1981
    %v1983 = vrot.slane %v1760, %v1982
    %1984 = vrot.lane.b32.xlu0 %v1983, 96
    %v1985 = vpop.permute.xlu0 %1984
    %1987 = vst.msk [vmem:[#allocation8] sm:$0x1] %vm278, %v1985
    %1989 = vrot.lane.b32.xlu0 %v1878, 96
    %v1990 = vpop.permute.xlu0 %1989
    %1992 = vst.msk [vmem:[#allocation8 + $0x1] sm:$0x1] %vm278, %v1990
    // Predicated region
    $region38: #{simple_rnn_forward.1} parent=1 // pred_check
      _
    $region39: #{simple_rnn_forward.1} parent=1 // pred_check_branch
      %1994 = sbr.rel (0) target = $region41
    $region40: #{simple_rnn_forward.1} parent=1 // pred_region
      _
    $region41: #{simple_rnn_forward.1} parent=1 // pred_fallthru
      _
    // Predicated region
    $region42: #{simple_rnn_forward.1} parent=1 // pred_check
      _
    $region43: #{simple_rnn_forward.1} parent=1 // pred_check_branch
      %1996 = sbr.rel (0) target = $region45
    $region44: #{simple_rnn_forward.1} parent=1 // pred_region
      %s1998 = ssub.s32 32, 32
      %1999 = vsyncadd [#allocation5], %s1998
      %s2001 = sshll.u32 [#allocation7], 4
      %s2002 = int_to_ptr.vmem [resolvable:$true] %s2001
      %2004 = dma.vmem_to_hbm [thread:$0]  %s2002, 32, %s9, [#allocation5]
    $region45: #{simple_rnn_forward.1} parent=1 // pred_fallthru
      _
    // Predicated region
    $region46: #{simple_rnn_forward.1} parent=1 // pred_check
      _
    $region47: #{simple_rnn_forward.1} parent=1 // pred_check_branch
      %2006 = sbr.rel (0) target = $region49
    $region48: #{simple_rnn_forward.1} parent=1 // pred_region
      %s2008 = ssub.s32 32, 32
      %2009 = vsyncadd [#allocation9], %s2008
      %s2011 = sshll.u32 [#allocation8], 4
      %s2012 = int_to_ptr.vmem [resolvable:$true] %s2011
      %2014 = dma.vmem_to_hbm [thread:$0]  %s2012, 32, %s10, [#allocation9]
    $region49: #{simple_rnn_forward.1} parent=1 // pred_fallthru
      _
    // Predicated region
    $region50: #{simple_rnn_forward.1} parent=1 // pred_check
      _
    $region51: #{simple_rnn_forward.1} parent=1 // pred_check_branch
      %2016 = sbr.rel (0) target = $region53
    $region52: #{simple_rnn_forward.1} parent=1 // pred_region
      _
    $region53: #{simple_rnn_forward.1} parent=1 // pred_fallthru
      _
    // Predicated region
    $region54: #{simple_rnn_forward.1} parent=1 // pred_check
      _
    $region55: #{simple_rnn_forward.1} parent=1 // pred_check_branch
      %2018 = sbr.rel (0) target = $region57
    $region56: #{simple_rnn_forward.1} parent=1 // pred_region
      %2019 = dma.done [#allocation5], 32
    $region57: #{simple_rnn_forward.1} parent=1 // pred_fallthru
      _
    // Predicated region
    $region58: #{simple_rnn_forward.1} parent=1 // pred_check
      _
    $region59: #{simple_rnn_forward.1} parent=1 // pred_check_branch
      %2021 = sbr.rel (0) target = $region61
    $region60: #{simple_rnn_forward.1} parent=1 // pred_region
      %2022 = dma.done [#allocation9], 32
    $region61: #{simple_rnn_forward.1} parent=1 // pred_fallthru
      _
    %2023 = vsyncpa [#allocation5], 1
    %2024 = vsyncpa [#allocation9], 1
    %2025 = vsyncpa [#allocation6], 1

</llo_original>
